<compile_context>
chip_gen: v6e
topology: v6e:2x2x1
jax: 0.10.0
libtpu: 0.0.40
codegen_flags: <defaults>
</compile_context>

<pallas_src>
import functools

import jax
import jax.numpy as jnp
import numpy as np
from jax import lax
from jax.experimental import pallas as pl
from jax.experimental.pallas import tpu as pltpu


def _gru_chunk_kernel(xp_ref, m_ref, h0_ref, wh_ref, bh_ref, out_ref, h_scratch,
                      *, Tc, Hp):
    """One grid step == Tc time steps of the forward GRU recurrence."""
    c = pl.program_id(0)

    @pl.when(c == 0)
    def _():
        h_scratch[...] = h0_ref[...]

    wh = wh_ref[...]          # (Hp, 3*Hp)   fused [W_hr | W_hz | W_hn]
    bh = bh_ref[...]          # (1, 3*Hp)    only b_hn is non-zero (n-gate slot)

    def step(i, h_prev):
        xp = xp_ref[i]        # (B, 3*Hp)  pre-projected input (biases folded in)
        m = m_ref[i]          # (B, Hp)    lane-dense mask
        hp = jnp.dot(h_prev, wh, preferred_element_type=jnp.float32) + bh
        r = jnp.maximum(xp[:, 0 * Hp:1 * Hp] + hp[:, 0 * Hp:1 * Hp], 0.0)
        z = jnp.maximum(xp[:, 1 * Hp:2 * Hp] + hp[:, 1 * Hp:2 * Hp], 0.0)
        n = jnp.tanh(xp[:, 2 * Hp:3 * Hp] + r * hp[:, 2 * Hp:3 * Hp])
        h_new = (1.0 - z) * h_prev + z * n
        h_new = h_new * m     # masked_fill_(1 - mask, 0)  (mask in {0,1})
        out_ref[i] = h_new.astype(out_ref.dtype)
        return h_new

    h_final = lax.fori_loop(0, Tc, step, h_scratch[...], unroll=True)
    h_scratch[...] = h_final


def my_gru_forward(inp, hidden, mask, params, *, time_chunk=8):
    """Pallas implementation of MyGRU.forward (batch_first=False, bidirectional=True)."""
    S, B, I = inp.shape
    H = params["w_hr"].shape[0]

    # Lane-dense padding of the hidden size, and time-axis chunking.
    Hp = max(128, ((H + 127) // 128) * 128)
    Tc = min(time_chunk, S)
    Sp = ((S + Tc - 1) // Tc) * Tc

    f32 = jnp.float32

    # ---- Hoisted input projection: one big parallel matmul (done by XLA) ----
    # nn.Linear computes x @ W.T + b.
    W_i = jnp.concatenate(
        [params["w_ir"].T, params["w_iz"].T, params["w_in"].T], axis=1)  # (I, 3H)
    b_comb = jnp.concatenate(
        [params["b_ir"] + params["b_hr"],          # r gate: fold b_ir + b_hr
         params["b_iz"] + params["b_hz"],          # z gate: fold b_iz + b_hz
         params["b_in"]], axis=0)                  # n gate: b_in only (b_hn stays with r*(...))
    xp = inp.reshape(S * B, I).astype(f32) @ W_i.astype(f32) + b_comb[None, :]
    xp = xp.reshape(S, B, 3, H)
    xp = jnp.pad(xp, ((0, Sp - S), (0, 0), (0, 0), (0, Hp - H)))
    xp = xp.reshape(Sp, B, 3 * Hp)                                      # (Sp, B, 3*Hp)

    # ---- Fused, padded hidden-side weights / bias ----
    def pad_wh(w):  # torch layout (out, in) -> (Hp in-rows, Hp out-cols)
        return jnp.pad(w.T.astype(f32), ((0, Hp - H), (0, Hp - H)))

    Wh_p = jnp.concatenate(
        [pad_wh(params["w_hr"]), pad_wh(params["w_hz"]), pad_wh(params["w_hn"])],
        axis=1)                                                         # (Hp, 3*Hp)
    bh_p = jnp.concatenate(
        [jnp.zeros((2 * Hp,), f32),
         jnp.pad(params["b_hn"].astype(f32), (0, Hp - H))])[None, :]    # (1, 3*Hp)

    h0_p = jnp.pad(hidden[0].astype(f32), ((0, 0), (0, Hp - H)))        # (B, Hp)

    # Lane-dense mask (avoid last-dim-1 VMEM tiles).
    mask_p = jnp.pad(mask.astype(f32), ((0, Sp - S), (0, 0)))           # (Sp, B)
    mask_dense = jnp.broadcast_to(mask_p[:, :, None], (Sp, B, Hp))      # (Sp, B, Hp)

    grid_spec = pltpu.PrefetchScalarGridSpec(
        num_scalar_prefetch=0,
        grid=(Sp // Tc,),
        in_specs=[
            pl.BlockSpec((Tc, B, 3 * Hp), lambda c: (c, 0, 0)),   # x_proj chunk
            pl.BlockSpec((Tc, B, Hp), lambda c: (c, 0, 0)),       # mask chunk
            pl.BlockSpec((B, Hp), lambda c: (0, 0)),              # h0 (grid-invariant)
            pl.BlockSpec((Hp, 3 * Hp), lambda c: (0, 0)),         # fused W_h (grid-invariant)
            pl.BlockSpec((1, 3 * Hp), lambda c: (0, 0)),          # b_h (only b_hn non-zero)
        ],
        out_specs=pl.BlockSpec((Tc, B, Hp), lambda c: (c, 0, 0)),
        scratch_shapes=[pltpu.VMEM((B, Hp), jnp.float32)],
    )

    kernel = functools.partial(_gru_chunk_kernel, Tc=Tc, Hp=Hp)
    fwd_p = pl.pallas_call(
        kernel,
        out_shape=jax.ShapeDtypeStruct((Sp, B, Hp), jnp.float32),
        grid_spec=grid_spec,
        compiler_params=pltpu.CompilerParams(
            dimension_semantics=("arbitrary",),       # time axis is serial (scratch carry)
            vmem_limit_bytes=48 * 1024 * 1024,        # headroom for production sizes, < v7x 64 MiB
        ),
    )(xp, mask_dense, h0_p, Wh_p, bh_p)

    # Strip padding; replicate the FINAL forward hidden (reference semantics).
    fwd = fwd_p[:S, :, :H]                                              # (S, B, H)
    final_h = fwd[S - 1]                                                # (B, H)
    # TODO(synk): this concat/broadcast is a cheap XLA epilogue; it could be
    # folded into the kernel's out_spec (2H-wide output) to save one HBM pass.
    out = jnp.concatenate(
        [fwd, jnp.broadcast_to(final_h[None], (S, B, H))], axis=-1)     # (S, B, 2H)
    return out


def my_gru_reference(inp, hidden, mask, params):
    """Pure-JAX reproduction of the PyTorch forward (for correctness check)."""
    S = inp.shape[0]
    mask3 = mask[..., None].astype(jnp.float32)

    def lin(v, w, b):
        return v @ w.T + b

    h = hidden[0]
    outs = []
    for i in range(S):
        hp = h
        r = jax.nn.relu(lin(inp[i], params["w_ir"], params["b_ir"]) +
                        lin(hp, params["w_hr"], params["b_hr"]))
        z = jax.nn.relu(lin(inp[i], params["w_iz"], params["b_iz"]) +
                        lin(hp, params["w_hz"], params["b_hz"]))
        n = jnp.tanh(lin(inp[i], params["w_in"], params["b_in"]) +
                     r * lin(hp, params["w_hn"], params["b_hn"]))
        h = (1.0 - z) * hp + z * n
        h = h * mask3[i]
        outs.append(h)
    f_final = outs[-1]
    outs = [jnp.concatenate([o, f_final], axis=-1) for o in outs]
    return jnp.stack(outs, axis=0)


if __name__ == "__main__":
    S, B, I, H = 8, 2, 16, 32   # seq, batch, input_size, hidden_size

    key = jax.random.PRNGKey(0)
    ks = jax.random.split(key, 16)

    inp = jax.random.normal(ks[0], (S, B, I), jnp.float32)
    hidden = jax.random.normal(ks[1], (2, B, H), jnp.float32)
    # mask: per-batch sequence lengths -> 0/1 mask (seq, batch)
    lengths = jnp.array([S, S - 3])
    mask = (jnp.arange(S)[:, None] < lengths[None, :]).astype(jnp.float32)

    scale = 0.1
    params = {
        "w_ir": scale * jax.random.normal(ks[2], (H, I), jnp.float32),
        "w_iz": scale * jax.random.normal(ks[3], (H, I), jnp.float32),
        "w_in": scale * jax.random.normal(ks[4], (H, I), jnp.float32),
        "w_hr": scale * jax.random.normal(ks[5], (H, H), jnp.float32),
        "w_hz": scale * jax.random.normal(ks[6], (H, H), jnp.float32),
        "w_hn": scale * jax.random.normal(ks[7], (H, H), jnp.float32),
        "b_ir": scale * jax.random.normal(ks[8], (H,), jnp.float32),
        "b_iz": scale * jax.random.normal(ks[9], (H,), jnp.float32),
        "b_in": scale * jax.random.normal(ks[10], (H,), jnp.float32),
        "b_hr": scale * jax.random.normal(ks[11], (H,), jnp.float32),
        "b_hz": scale * jax.random.normal(ks[12], (H,), jnp.float32),
        "b_hn": scale * jax.random.normal(ks[13], (H,), jnp.float32),
    }

    out = my_gru_forward(inp, hidden, mask, params)
    out = jax.block_until_ready(out)
    assert out.shape == (S, B, 2 * H), out.shape

    ref = my_gru_reference(inp, hidden, mask, params)
    np.testing.assert_allclose(np.asarray(out), np.asarray(ref), atol=5e-4, rtol=5e-4)

    print("KERNEL_OK")
</pallas_src>

<mosaic_0001>
module attributes {stable_mosaic.version = 11 : i64} {
  func.func @_gru_chunk_kernel(%arg0: i32, %arg1: memref<8x2x384xf32, #tpu.memory_space<vmem>>, %arg2: memref<8x2x128xf32, #tpu.memory_space<vmem>>, %arg3: memref<2x128xf32, #tpu.memory_space<vmem>>, %arg4: memref<128x384xf32, #tpu.memory_space<vmem>>, %arg5: memref<1x384xf32, #tpu.memory_space<vmem>>, %arg6: memref<8x2x128xf32, #tpu.memory_space<vmem>>, %arg7: memref<2x128xf32, #tpu.memory_space<vmem>>) attributes {dimension_semantics = [#tpu.dimension_semantics<arbitrary>], iteration_bounds = array<i64: 1>, scalar_prefetch = 0 : i64, scratch_operands = 1 : i64, tpu.core_type = #tpu.core_type<tc>, window_params = [{transform_indices = @transform_0, window_bounds = array<i64: 8, 2, 384>}, {transform_indices = @transform_1, window_bounds = array<i64: 8, 2, 128>}, {pipeline_mode = #tpu.pipeline_mode<synchronous>, transform_indices = @transform_2, window_bounds = array<i64: 2, 128>}, {pipeline_mode = #tpu.pipeline_mode<synchronous>, transform_indices = @transform_3, window_bounds = array<i64: 128, 384>}, {pipeline_mode = #tpu.pipeline_mode<synchronous>, transform_indices = @transform_4, window_bounds = array<i64: 1, 384>}, {transform_indices = @transform_5, window_bounds = array<i64: 8, 2, 128>}]} {
    %c0_i32 = arith.constant 0 : i32
    %0 = arith.cmpi eq, %arg0, %c0_i32 : i32
    %1 = arith.extui %0 : i1 to i32
    %c0_i32_0 = arith.constant 0 : i32
    %2 = arith.cmpi ne, %1, %c0_i32_0 : i32
    scf.if %2 {
      %c0_88 = arith.constant 0 : index
      %c0_89 = arith.constant 0 : index
      %279 = vector.load %arg3[%c0_88, %c0_89] : memref<2x128xf32, #tpu.memory_space<vmem>>, vector<2x128xf32>
      %c0_90 = arith.constant 0 : index
      %c0_91 = arith.constant 0 : index
      %280 = vector.load %arg7[%c0_90, %c0_91] : memref<2x128xf32, #tpu.memory_space<vmem>>, vector<2x128xf32>
      tpu.vector_store %arg7[%c0_90, %c0_91], %279 {strides = array<i32>} : memref<2x128xf32, #tpu.memory_space<vmem>>, vector<2x128xf32>,
    } else {
    }
    %c0 = arith.constant 0 : index
    %c0_1 = arith.constant 0 : index
    %3 = vector.load %arg4[%c0, %c0_1] : memref<128x384xf32, #tpu.memory_space<vmem>>, vector<128x384xf32>
    %c0_2 = arith.constant 0 : index
    %c0_3 = arith.constant 0 : index
    %4 = vector.load %arg5[%c0_2, %c0_3] : memref<1x384xf32, #tpu.memory_space<vmem>>, vector<1x384xf32>
    %c0_4 = arith.constant 0 : index
    %c0_5 = arith.constant 0 : index
    %5 = vector.load %arg7[%c0_4, %c0_5] : memref<2x128xf32, #tpu.memory_space<vmem>>, vector<2x128xf32>
    %c0_i32_6 = arith.constant 0 : i32
    %6 = arith.index_cast %c0_i32_6 : i32 to index
    %c0_7 = arith.constant 0 : index
    %c0_8 = arith.constant 0 : index
    %7 = vector.load %arg1[%6, %c0_7, %c0_8] : memref<8x2x384xf32, #tpu.memory_space<vmem>>, vector<1x2x384xf32>
    %8 = vector.shape_cast %7 : vector<1x2x384xf32> to vector<2x384xf32>
    %9 = arith.index_cast %c0_i32_6 : i32 to index
    %c0_9 = arith.constant 0 : index
    %c0_10 = arith.constant 0 : index
    %10 = vector.load %arg2[%9, %c0_9, %c0_10] : memref<8x2x128xf32, #tpu.memory_space<vmem>>, vector<1x2x128xf32>
    %11 = vector.shape_cast %10 : vector<1x2x128xf32> to vector<2x128xf32>
    %cst = arith.constant dense<0.000000e+00> : vector<2x384xf32>
    %12 = tpu.matmul %5, %3, %cst {dimension_numbers = #tpu.dot_dimension_numbers<[1], [0], [0], [1], [0, 0, 1, 1], [], []>} : vector<2x128xf32>, vector<128x384xf32>, vector<2x384xf32> -> vector<2x384xf32>
    %13 = vector.broadcast %4 : vector<1x384xf32> to vector<2x384xf32>
    %14 = arith.addf %12, %13 : vector<2x384xf32>
    %15 = vector.extract_strided_slice %8 {offsets = [0, 0], sizes = [2, 128], strides = [1, 1]} : vector<2x384xf32> to vector<2x128xf32>
    %16 = vector.extract_strided_slice %14 {offsets = [0, 0], sizes = [2, 128], strides = [1, 1]} : vector<2x384xf32> to vector<2x128xf32>
    %17 = arith.addf %15, %16 : vector<2x128xf32>
    %cst_11 = arith.constant 0.000000e+00 : f32
    %18 = vector.broadcast %cst_11 : f32 to vector<2x128xf32>
    %19 = arith.maximumf %17, %18 : vector<2x128xf32>
    %20 = vector.extract_strided_slice %8 {offsets = [0, 128], sizes = [2, 128], strides = [1, 1]} : vector<2x384xf32> to vector<2x128xf32>
    %21 = vector.extract_strided_slice %14 {offsets = [0, 128], sizes = [2, 128], strides = [1, 1]} : vector<2x384xf32> to vector<2x128xf32>
    %22 = arith.addf %20, %21 : vector<2x128xf32>
    %cst_12 = arith.constant 0.000000e+00 : f32
    %23 = vector.broadcast %cst_12 : f32 to vector<2x128xf32>
    %24 = arith.maximumf %22, %23 : vector<2x128xf32>
    %25 = vector.extract_strided_slice %8 {offsets = [0, 256], sizes = [2, 128], strides = [1, 1]} : vector<2x384xf32> to vector<2x128xf32>
    %26 = vector.extract_strided_slice %14 {offsets = [0, 256], sizes = [2, 128], strides = [1, 1]} : vector<2x384xf32> to vector<2x128xf32>
    %27 = arith.mulf %19, %26 : vector<2x128xf32>
    %28 = arith.addf %25, %27 : vector<2x128xf32>
    %29 = math.tanh %28 : vector<2x128xf32>
    %cst_13 = arith.constant 1.000000e+00 : f32
    %30 = vector.broadcast %cst_13 : f32 to vector<2x128xf32>
    %31 = arith.subf %30, %24 : vector<2x128xf32>
    %32 = arith.mulf %31, %5 : vector<2x128xf32>
    %33 = arith.mulf %24, %29 : vector<2x128xf32>
    %34 = arith.addf %32, %33 : vector<2x128xf32>
    %35 = arith.mulf %34, %11 : vector<2x128xf32>
    %36 = arith.index_cast %c0_i32_6 : i32 to index
    %c0_14 = arith.constant 0 : index
    %c0_15 = arith.constant 0 : index
    %37 = vector.load %arg6[%36, %c0_14, %c0_15] : memref<8x2x128xf32, #tpu.memory_space<vmem>>, vector<1x2x128xf32>
    %38 = vector.shape_cast %37 : vector<1x2x128xf32> to vector<2x128xf32>
    %39 = vector.shape_cast %35 : vector<2x128xf32> to vector<1x2x128xf32>
    tpu.vector_store %arg6[%36, %c0_14, %c0_15], %39 {strides = array<i32>} : memref<8x2x128xf32, #tpu.memory_space<vmem>>, vector<1x2x128xf32>,
    %c1_i32 = arith.constant 1 : i32
    %40 = arith.index_cast %c1_i32 : i32 to index
    %c0_16 = arith.constant 0 : index
    %c0_17 = arith.constant 0 : index
    %41 = vector.load %arg1[%40, %c0_16, %c0_17] : memref<8x2x384xf32, #tpu.memory_space<vmem>>, vector<1x2x384xf32>
    %42 = vector.shape_cast %41 : vector<1x2x384xf32> to vector<2x384xf32>
    %43 = arith.index_cast %c1_i32 : i32 to index
    %c0_18 = arith.constant 0 : index
    %c0_19 = arith.constant 0 : index
    %44 = vector.load %arg2[%43, %c0_18, %c0_19] : memref<8x2x128xf32, #tpu.memory_space<vmem>>, vector<1x2x128xf32>
    %45 = vector.shape_cast %44 : vector<1x2x128xf32> to vector<2x128xf32>
    %cst_20 = arith.constant dense<0.000000e+00> : vector<2x384xf32>
    %46 = tpu.matmul %35, %3, %cst_20 {dimension_numbers = #tpu.dot_dimension_numbers<[1], [0], [0], [1], [0, 0, 1, 1], [], []>} : vector<2x128xf32>, vector<128x384xf32>, vector<2x384xf32> -> vector<2x384xf32>
    %47 = vector.broadcast %4 : vector<1x384xf32> to vector<2x384xf32>
    %48 = arith.addf %46, %47 : vector<2x384xf32>
    %49 = vector.extract_strided_slice %42 {offsets = [0, 0], sizes = [2, 128], strides = [1, 1]} : vector<2x384xf32> to vector<2x128xf32>
    %50 = vector.extract_strided_slice %48 {offsets = [0, 0], sizes = [2, 128], strides = [1, 1]} : vector<2x384xf32> to vector<2x128xf32>
    %51 = arith.addf %49, %50 : vector<2x128xf32>
    %cst_21 = arith.constant 0.000000e+00 : f32
    %52 = vector.broadcast %cst_21 : f32 to vector<2x128xf32>
    %53 = arith.maximumf %51, %52 : vector<2x128xf32>
    %54 = vector.extract_strided_slice %42 {offsets = [0, 128], sizes = [2, 128], strides = [1, 1]} : vector<2x384xf32> to vector<2x128xf32>
    %55 = vector.extract_strided_slice %48 {offsets = [0, 128], sizes = [2, 128], strides = [1, 1]} : vector<2x384xf32> to vector<2x128xf32>
    %56 = arith.addf %54, %55 : vector<2x128xf32>
    %cst_22 = arith.constant 0.000000e+00 : f32
    %57 = vector.broadcast %cst_22 : f32 to vector<2x128xf32>
    %58 = arith.maximumf %56, %57 : vector<2x128xf32>
    %59 = vector.extract_strided_slice %42 {offsets = [0, 256], sizes = [2, 128], strides = [1, 1]} : vector<2x384xf32> to vector<2x128xf32>
    %60 = vector.extract_strided_slice %48 {offsets = [0, 256], sizes = [2, 128], strides = [1, 1]} : vector<2x384xf32> to vector<2x128xf32>
    %61 = arith.mulf %53, %60 : vector<2x128xf32>
    %62 = arith.addf %59, %61 : vector<2x128xf32>
    %63 = math.tanh %62 : vector<2x128xf32>
    %cst_23 = arith.constant 1.000000e+00 : f32
    %64 = vector.broadcast %cst_23 : f32 to vector<2x128xf32>
    %65 = arith.subf %64, %58 : vector<2x128xf32>
    %66 = arith.mulf %65, %35 : vector<2x128xf32>
    %67 = arith.mulf %58, %63 : vector<2x128xf32>
    %68 = arith.addf %66, %67 : vector<2x128xf32>
    %69 = arith.mulf %68, %45 : vector<2x128xf32>
    %70 = arith.index_cast %c1_i32 : i32 to index
    %c0_24 = arith.constant 0 : index
    %c0_25 = arith.constant 0 : index
    %71 = vector.load %arg6[%70, %c0_24, %c0_25] : memref<8x2x128xf32, #tpu.memory_space<vmem>>, vector<1x2x128xf32>
    %72 = vector.shape_cast %71 : vector<1x2x128xf32> to vector<2x128xf32>
    %73 = vector.shape_cast %69 : vector<2x128xf32> to vector<1x2x128xf32>
    tpu.vector_store %arg6[%70, %c0_24, %c0_25], %73 {strides = array<i32>} : memref<8x2x128xf32, #tpu.memory_space<vmem>>, vector<1x2x128xf32>,
    %c2_i32 = arith.constant 2 : i32
    %74 = arith.index_cast %c2_i32 : i32 to index
    %c0_26 = arith.constant 0 : index
    %c0_27 = arith.constant 0 : index
    %75 = vector.load %arg1[%74, %c0_26, %c0_27] : memref<8x2x384xf32, #tpu.memory_space<vmem>>, vector<1x2x384xf32>
    %76 = vector.shape_cast %75 : vector<1x2x384xf32> to vector<2x384xf32>
    %77 = arith.index_cast %c2_i32 : i32 to index
    %c0_28 = arith.constant 0 : index
    %c0_29 = arith.constant 0 : index
    %78 = vector.load %arg2[%77, %c0_28, %c0_29] : memref<8x2x128xf32, #tpu.memory_space<vmem>>, vector<1x2x128xf32>
    %79 = vector.shape_cast %78 : vector<1x2x128xf32> to vector<2x128xf32>
    %cst_30 = arith.constant dense<0.000000e+00> : vector<2x384xf32>
    %80 = tpu.matmul %69, %3, %cst_30 {dimension_numbers = #tpu.dot_dimension_numbers<[1], [0], [0], [1], [0, 0, 1, 1], [], []>} : vector<2x128xf32>, vector<128x384xf32>, vector<2x384xf32> -> vector<2x384xf32>
    %81 = vector.broadcast %4 : vector<1x384xf32> to vector<2x384xf32>
    %82 = arith.addf %80, %81 : vector<2x384xf32>
    %83 = vector.extract_strided_slice %76 {offsets = [0, 0], sizes = [2, 128], strides = [1, 1]} : vector<2x384xf32> to vector<2x128xf32>
    %84 = vector.extract_strided_slice %82 {offsets = [0, 0], sizes = [2, 128], strides = [1, 1]} : vector<2x384xf32> to vector<2x128xf32>
    %85 = arith.addf %83, %84 : vector<2x128xf32>
    %cst_31 = arith.constant 0.000000e+00 : f32
    %86 = vector.broadcast %cst_31 : f32 to vector<2x128xf32>
    %87 = arith.maximumf %85, %86 : vector<2x128xf32>
    %88 = vector.extract_strided_slice %76 {offsets = [0, 128], sizes = [2, 128], strides = [1, 1]} : vector<2x384xf32> to vector<2x128xf32>
    %89 = vector.extract_strided_slice %82 {offsets = [0, 128], sizes = [2, 128], strides = [1, 1]} : vector<2x384xf32> to vector<2x128xf32>
    %90 = arith.addf %88, %89 : vector<2x128xf32>
    %cst_32 = arith.constant 0.000000e+00 : f32
    %91 = vector.broadcast %cst_32 : f32 to vector<2x128xf32>
    %92 = arith.maximumf %90, %91 : vector<2x128xf32>
    %93 = vector.extract_strided_slice %76 {offsets = [0, 256], sizes = [2, 128], strides = [1, 1]} : vector<2x384xf32> to vector<2x128xf32>
    %94 = vector.extract_strided_slice %82 {offsets = [0, 256], sizes = [2, 128], strides = [1, 1]} : vector<2x384xf32> to vector<2x128xf32>
    %95 = arith.mulf %87, %94 : vector<2x128xf32>
    %96 = arith.addf %93, %95 : vector<2x128xf32>
    %97 = math.tanh %96 : vector<2x128xf32>
    %cst_33 = arith.constant 1.000000e+00 : f32
    %98 = vector.broadcast %cst_33 : f32 to vector<2x128xf32>
    %99 = arith.subf %98, %92 : vector<2x128xf32>
    %100 = arith.mulf %99, %69 : vector<2x128xf32>
    %101 = arith.mulf %92, %97 : vector<2x128xf32>
    %102 = arith.addf %100, %101 : vector<2x128xf32>
    %103 = arith.mulf %102, %79 : vector<2x128xf32>
    %104 = arith.index_cast %c2_i32 : i32 to index
    %c0_34 = arith.constant 0 : index
    %c0_35 = arith.constant 0 : index
    %105 = vector.load %arg6[%104, %c0_34, %c0_35] : memref<8x2x128xf32, #tpu.memory_space<vmem>>, vector<1x2x128xf32>
    %106 = vector.shape_cast %105 : vector<1x2x128xf32> to vector<2x128xf32>
    %107 = vector.shape_cast %103 : vector<2x128xf32> to vector<1x2x128xf32>
    tpu.vector_store %arg6[%104, %c0_34, %c0_35], %107 {strides = array<i32>} : memref<8x2x128xf32, #tpu.memory_space<vmem>>, vector<1x2x128xf32>,
    %c3_i32 = arith.constant 3 : i32
    %108 = arith.index_cast %c3_i32 : i32 to index
    %c0_36 = arith.constant 0 : index
    %c0_37 = arith.constant 0 : index
    %109 = vector.load %arg1[%108, %c0_36, %c0_37] : memref<8x2x384xf32, #tpu.memory_space<vmem>>, vector<1x2x384xf32>
    %110 = vector.shape_cast %109 : vector<1x2x384xf32> to vector<2x384xf32>
    %111 = arith.index_cast %c3_i32 : i32 to index
    %c0_38 = arith.constant 0 : index
    %c0_39 = arith.constant 0 : index
    %112 = vector.load %arg2[%111, %c0_38, %c0_39] : memref<8x2x128xf32, #tpu.memory_space<vmem>>, vector<1x2x128xf32>
    %113 = vector.shape_cast %112 : vector<1x2x128xf32> to vector<2x128xf32>
    %cst_40 = arith.constant dense<0.000000e+00> : vector<2x384xf32>
    %114 = tpu.matmul %103, %3, %cst_40 {dimension_numbers = #tpu.dot_dimension_numbers<[1], [0], [0], [1], [0, 0, 1, 1], [], []>} : vector<2x128xf32>, vector<128x384xf32>, vector<2x384xf32> -> vector<2x384xf32>
    %115 = vector.broadcast %4 : vector<1x384xf32> to vector<2x384xf32>
    %116 = arith.addf %114, %115 : vector<2x384xf32>
    %117 = vector.extract_strided_slice %110 {offsets = [0, 0], sizes = [2, 128], strides = [1, 1]} : vector<2x384xf32> to vector<2x128xf32>
    %118 = vector.extract_strided_slice %116 {offsets = [0, 0], sizes = [2, 128], strides = [1, 1]} : vector<2x384xf32> to vector<2x128xf32>
    %119 = arith.addf %117, %118 : vector<2x128xf32>
    %cst_41 = arith.constant 0.000000e+00 : f32
    %120 = vector.broadcast %cst_41 : f32 to vector<2x128xf32>
    %121 = arith.maximumf %119, %120 : vector<2x128xf32>
    %122 = vector.extract_strided_slice %110 {offsets = [0, 128], sizes = [2, 128], strides = [1, 1]} : vector<2x384xf32> to vector<2x128xf32>
    %123 = vector.extract_strided_slice %116 {offsets = [0, 128], sizes = [2, 128], strides = [1, 1]} : vector<2x384xf32> to vector<2x128xf32>
    %124 = arith.addf %122, %123 : vector<2x128xf32>
    %cst_42 = arith.constant 0.000000e+00 : f32
    %125 = vector.broadcast %cst_42 : f32 to vector<2x128xf32>
    %126 = arith.maximumf %124, %125 : vector<2x128xf32>
    %127 = vector.extract_strided_slice %110 {offsets = [0, 256], sizes = [2, 128], strides = [1, 1]} : vector<2x384xf32> to vector<2x128xf32>
    %128 = vector.extract_strided_slice %116 {offsets = [0, 256], sizes = [2, 128], strides = [1, 1]} : vector<2x384xf32> to vector<2x128xf32>
    %129 = arith.mulf %121, %128 : vector<2x128xf32>
    %130 = arith.addf %127, %129 : vector<2x128xf32>
    %131 = math.tanh %130 : vector<2x128xf32>
    %cst_43 = arith.constant 1.000000e+00 : f32
    %132 = vector.broadcast %cst_43 : f32 to vector<2x128xf32>
    %133 = arith.subf %132, %126 : vector<2x128xf32>
    %134 = arith.mulf %133, %103 : vector<2x128xf32>
    %135 = arith.mulf %126, %131 : vector<2x128xf32>
    %136 = arith.addf %134, %135 : vector<2x128xf32>
    %137 = arith.mulf %136, %113 : vector<2x128xf32>
    %138 = arith.index_cast %c3_i32 : i32 to index
    %c0_44 = arith.constant 0 : index
    %c0_45 = arith.constant 0 : index
    %139 = vector.load %arg6[%138, %c0_44, %c0_45] : memref<8x2x128xf32, #tpu.memory_space<vmem>>, vector<1x2x128xf32>
    %140 = vector.shape_cast %139 : vector<1x2x128xf32> to vector<2x128xf32>
    %141 = vector.shape_cast %137 : vector<2x128xf32> to vector<1x2x128xf32>
    tpu.vector_store %arg6[%138, %c0_44, %c0_45], %141 {strides = array<i32>} : memref<8x2x128xf32, #tpu.memory_space<vmem>>, vector<1x2x128xf32>,
    %c4_i32 = arith.constant 4 : i32
    %142 = arith.index_cast %c4_i32 : i32 to index
    %c0_46 = arith.constant 0 : index
    %c0_47 = arith.constant 0 : index
    %143 = vector.load %arg1[%142, %c0_46, %c0_47] : memref<8x2x384xf32, #tpu.memory_space<vmem>>, vector<1x2x384xf32>
    %144 = vector.shape_cast %143 : vector<1x2x384xf32> to vector<2x384xf32>
    %145 = arith.index_cast %c4_i32 : i32 to index
    %c0_48 = arith.constant 0 : index
    %c0_49 = arith.constant 0 : index
    %146 = vector.load %arg2[%145, %c0_48, %c0_49] : memref<8x2x128xf32, #tpu.memory_space<vmem>>, vector<1x2x128xf32>
    %147 = vector.shape_cast %146 : vector<1x2x128xf32> to vector<2x128xf32>
    %cst_50 = arith.constant dense<0.000000e+00> : vector<2x384xf32>
    %148 = tpu.matmul %137, %3, %cst_50 {dimension_numbers = #tpu.dot_dimension_numbers<[1], [0], [0], [1], [0, 0, 1, 1], [], []>} : vector<2x128xf32>, vector<128x384xf32>, vector<2x384xf32> -> vector<2x384xf32>
    %149 = vector.broadcast %4 : vector<1x384xf32> to vector<2x384xf32>
    %150 = arith.addf %148, %149 : vector<2x384xf32>
    %151 = vector.extract_strided_slice %144 {offsets = [0, 0], sizes = [2, 128], strides = [1, 1]} : vector<2x384xf32> to vector<2x128xf32>
    %152 = vector.extract_strided_slice %150 {offsets = [0, 0], sizes = [2, 128], strides = [1, 1]} : vector<2x384xf32> to vector<2x128xf32>
    %153 = arith.addf %151, %152 : vector<2x128xf32>
    %cst_51 = arith.constant 0.000000e+00 : f32
    %154 = vector.broadcast %cst_51 : f32 to vector<2x128xf32>
    %155 = arith.maximumf %153, %154 : vector<2x128xf32>
    %156 = vector.extract_strided_slice %144 {offsets = [0, 128], sizes = [2, 128], strides = [1, 1]} : vector<2x384xf32> to vector<2x128xf32>
    %157 = vector.extract_strided_slice %150 {offsets = [0, 128], sizes = [2, 128], strides = [1, 1]} : vector<2x384xf32> to vector<2x128xf32>
    %158 = arith.addf %156, %157 : vector<2x128xf32>
    %cst_52 = arith.constant 0.000000e+00 : f32
    %159 = vector.broadcast %cst_52 : f32 to vector<2x128xf32>
    %160 = arith.maximumf %158, %159 : vector<2x128xf32>
    %161 = vector.extract_strided_slice %144 {offsets = [0, 256], sizes = [2, 128], strides = [1, 1]} : vector<2x384xf32> to vector<2x128xf32>
    %162 = vector.extract_strided_slice %150 {offsets = [0, 256], sizes = [2, 128], strides = [1, 1]} : vector<2x384xf32> to vector<2x128xf32>
    %163 = arith.mulf %155, %162 : vector<2x128xf32>
    %164 = arith.addf %161, %163 : vector<2x128xf32>
    %165 = math.tanh %164 : vector<2x128xf32>
    %cst_53 = arith.constant 1.000000e+00 : f32
    %166 = vector.broadcast %cst_53 : f32 to vector<2x128xf32>
    %167 = arith.subf %166, %160 : vector<2x128xf32>
    %168 = arith.mulf %167, %137 : vector<2x128xf32>
    %169 = arith.mulf %160, %165 : vector<2x128xf32>
    %170 = arith.addf %168, %169 : vector<2x128xf32>
    %171 = arith.mulf %170, %147 : vector<2x128xf32>
    %172 = arith.index_cast %c4_i32 : i32 to index
    %c0_54 = arith.constant 0 : index
    %c0_55 = arith.constant 0 : index
    %173 = vector.load %arg6[%172, %c0_54, %c0_55] : memref<8x2x128xf32, #tpu.memory_space<vmem>>, vector<1x2x128xf32>
    %174 = vector.shape_cast %173 : vector<1x2x128xf32> to vector<2x128xf32>
    %175 = vector.shape_cast %171 : vector<2x128xf32> to vector<1x2x128xf32>
    tpu.vector_store %arg6[%172, %c0_54, %c0_55], %175 {strides = array<i32>} : memref<8x2x128xf32, #tpu.memory_space<vmem>>, vector<1x2x128xf32>,
    %c5_i32 = arith.constant 5 : i32
    %176 = arith.index_cast %c5_i32 : i32 to index
    %c0_56 = arith.constant 0 : index
    %c0_57 = arith.constant 0 : index
    %177 = vector.load %arg1[%176, %c0_56, %c0_57] : memref<8x2x384xf32, #tpu.memory_space<vmem>>, vector<1x2x384xf32>
    %178 = vector.shape_cast %177 : vector<1x2x384xf32> to vector<2x384xf32>
    %179 = arith.index_cast %c5_i32 : i32 to index
    %c0_58 = arith.constant 0 : index
    %c0_59 = arith.constant 0 : index
    %180 = vector.load %arg2[%179, %c0_58, %c0_59] : memref<8x2x128xf32, #tpu.memory_space<vmem>>, vector<1x2x128xf32>
    %181 = vector.shape_cast %180 : vector<1x2x128xf32> to vector<2x128xf32>
    %cst_60 = arith.constant dense<0.000000e+00> : vector<2x384xf32>
    %182 = tpu.matmul %171, %3, %cst_60 {dimension_numbers = #tpu.dot_dimension_numbers<[1], [0], [0], [1], [0, 0, 1, 1], [], []>} : vector<2x128xf32>, vector<128x384xf32>, vector<2x384xf32> -> vector<2x384xf32>
    %183 = vector.broadcast %4 : vector<1x384xf32> to vector<2x384xf32>
    %184 = arith.addf %182, %183 : vector<2x384xf32>
    %185 = vector.extract_strided_slice %178 {offsets = [0, 0], sizes = [2, 128], strides = [1, 1]} : vector<2x384xf32> to vector<2x128xf32>
    %186 = vector.extract_strided_slice %184 {offsets = [0, 0], sizes = [2, 128], strides = [1, 1]} : vector<2x384xf32> to vector<2x128xf32>
    %187 = arith.addf %185, %186 : vector<2x128xf32>
    %cst_61 = arith.constant 0.000000e+00 : f32
    %188 = vector.broadcast %cst_61 : f32 to vector<2x128xf32>
    %189 = arith.maximumf %187, %188 : vector<2x128xf32>
    %190 = vector.extract_strided_slice %178 {offsets = [0, 128], sizes = [2, 128], strides = [1, 1]} : vector<2x384xf32> to vector<2x128xf32>
    %191 = vector.extract_strided_slice %184 {offsets = [0, 128], sizes = [2, 128], strides = [1, 1]} : vector<2x384xf32> to vector<2x128xf32>
    %192 = arith.addf %190, %191 : vector<2x128xf32>
    %cst_62 = arith.constant 0.000000e+00 : f32
    %193 = vector.broadcast %cst_62 : f32 to vector<2x128xf32>
    %194 = arith.maximumf %192, %193 : vector<2x128xf32>
    %195 = vector.extract_strided_slice %178 {offsets = [0, 256], sizes = [2, 128], strides = [1, 1]} : vector<2x384xf32> to vector<2x128xf32>
    %196 = vector.extract_strided_slice %184 {offsets = [0, 256], sizes = [2, 128], strides = [1, 1]} : vector<2x384xf32> to vector<2x128xf32>
    %197 = arith.mulf %189, %196 : vector<2x128xf32>
    %198 = arith.addf %195, %197 : vector<2x128xf32>
    %199 = math.tanh %198 : vector<2x128xf32>
    %cst_63 = arith.constant 1.000000e+00 : f32
    %200 = vector.broadcast %cst_63 : f32 to vector<2x128xf32>
    %201 = arith.subf %200, %194 : vector<2x128xf32>
    %202 = arith.mulf %201, %171 : vector<2x128xf32>
    %203 = arith.mulf %194, %199 : vector<2x128xf32>
    %204 = arith.addf %202, %203 : vector<2x128xf32>
    %205 = arith.mulf %204, %181 : vector<2x128xf32>
    %206 = arith.index_cast %c5_i32 : i32 to index
    %c0_64 = arith.constant 0 : index
    %c0_65 = arith.constant 0 : index
    %207 = vector.load %arg6[%206, %c0_64, %c0_65] : memref<8x2x128xf32, #tpu.memory_space<vmem>>, vector<1x2x128xf32>
    %208 = vector.shape_cast %207 : vector<1x2x128xf32> to vector<2x128xf32>
    %209 = vector.shape_cast %205 : vector<2x128xf32> to vector<1x2x128xf32>
    tpu.vector_store %arg6[%206, %c0_64, %c0_65], %209 {strides = array<i32>} : memref<8x2x128xf32, #tpu.memory_space<vmem>>, vector<1x2x128xf32>,
    %c6_i32 = arith.constant 6 : i32
    %210 = arith.index_cast %c6_i32 : i32 to index
    %c0_66 = arith.constant 0 : index
    %c0_67 = arith.constant 0 : index
    %211 = vector.load %arg1[%210, %c0_66, %c0_67] : memref<8x2x384xf32, #tpu.memory_space<vmem>>, vector<1x2x384xf32>
    %212 = vector.shape_cast %211 : vector<1x2x384xf32> to vector<2x384xf32>
    %213 = arith.index_cast %c6_i32 : i32 to index
    %c0_68 = arith.constant 0 : index
    %c0_69 = arith.constant 0 : index
    %214 = vector.load %arg2[%213, %c0_68, %c0_69] : memref<8x2x128xf32, #tpu.memory_space<vmem>>, vector<1x2x128xf32>
    %215 = vector.shape_cast %214 : vector<1x2x128xf32> to vector<2x128xf32>
    %cst_70 = arith.constant dense<0.000000e+00> : vector<2x384xf32>
    %216 = tpu.matmul %205, %3, %cst_70 {dimension_numbers = #tpu.dot_dimension_numbers<[1], [0], [0], [1], [0, 0, 1, 1], [], []>} : vector<2x128xf32>, vector<128x384xf32>, vector<2x384xf32> -> vector<2x384xf32>
    %217 = vector.broadcast %4 : vector<1x384xf32> to vector<2x384xf32>
    %218 = arith.addf %216, %217 : vector<2x384xf32>
    %219 = vector.extract_strided_slice %212 {offsets = [0, 0], sizes = [2, 128], strides = [1, 1]} : vector<2x384xf32> to vector<2x128xf32>
    %220 = vector.extract_strided_slice %218 {offsets = [0, 0], sizes = [2, 128], strides = [1, 1]} : vector<2x384xf32> to vector<2x128xf32>
    %221 = arith.addf %219, %220 : vector<2x128xf32>
    %cst_71 = arith.constant 0.000000e+00 : f32
    %222 = vector.broadcast %cst_71 : f32 to vector<2x128xf32>
    %223 = arith.maximumf %221, %222 : vector<2x128xf32>
    %224 = vector.extract_strided_slice %212 {offsets = [0, 128], sizes = [2, 128], strides = [1, 1]} : vector<2x384xf32> to vector<2x128xf32>
    %225 = vector.extract_strided_slice %218 {offsets = [0, 128], sizes = [2, 128], strides = [1, 1]} : vector<2x384xf32> to vector<2x128xf32>
    %226 = arith.addf %224, %225 : vector<2x128xf32>
    %cst_72 = arith.constant 0.000000e+00 : f32
    %227 = vector.broadcast %cst_72 : f32 to vector<2x128xf32>
    %228 = arith.maximumf %226, %227 : vector<2x128xf32>
    %229 = vector.extract_strided_slice %212 {offsets = [0, 256], sizes = [2, 128], strides = [1, 1]} : vector<2x384xf32> to vector<2x128xf32>
    %230 = vector.extract_strided_slice %218 {offsets = [0, 256], sizes = [2, 128], strides = [1, 1]} : vector<2x384xf32> to vector<2x128xf32>
    %231 = arith.mulf %223, %230 : vector<2x128xf32>
    %232 = arith.addf %229, %231 : vector<2x128xf32>
    %233 = math.tanh %232 : vector<2x128xf32>
    %cst_73 = arith.constant 1.000000e+00 : f32
    %234 = vector.broadcast %cst_73 : f32 to vector<2x128xf32>
    %235 = arith.subf %234, %228 : vector<2x128xf32>
    %236 = arith.mulf %235, %205 : vector<2x128xf32>
    %237 = arith.mulf %228, %233 : vector<2x128xf32>
    %238 = arith.addf %236, %237 : vector<2x128xf32>
    %239 = arith.mulf %238, %215 : vector<2x128xf32>
    %240 = arith.index_cast %c6_i32 : i32 to index
    %c0_74 = arith.constant 0 : index
    %c0_75 = arith.constant 0 : index
    %241 = vector.load %arg6[%240, %c0_74, %c0_75] : memref<8x2x128xf32, #tpu.memory_space<vmem>>, vector<1x2x128xf32>
    %242 = vector.shape_cast %241 : vector<1x2x128xf32> to vector<2x128xf32>
    %243 = vector.shape_cast %239 : vector<2x128xf32> to vector<1x2x128xf32>
    tpu.vector_store %arg6[%240, %c0_74, %c0_75], %243 {strides = array<i32>} : memref<8x2x128xf32, #tpu.memory_space<vmem>>, vector<1x2x128xf32>,
    %c7_i32 = arith.constant 7 : i32
    %244 = arith.index_cast %c7_i32 : i32 to index
    %c0_76 = arith.constant 0 : index
    %c0_77 = arith.constant 0 : index
    %245 = vector.load %arg1[%244, %c0_76, %c0_77] : memref<8x2x384xf32, #tpu.memory_space<vmem>>, vector<1x2x384xf32>
    %246 = vector.shape_cast %245 : vector<1x2x384xf32> to vector<2x384xf32>
    %247 = arith.index_cast %c7_i32 : i32 to index
    %c0_78 = arith.constant 0 : index
    %c0_79 = arith.constant 0 : index
    %248 = vector.load %arg2[%247, %c0_78, %c0_79] : memref<8x2x128xf32, #tpu.memory_space<vmem>>, vector<1x2x128xf32>
    %249 = vector.shape_cast %248 : vector<1x2x128xf32> to vector<2x128xf32>
    %cst_80 = arith.constant dense<0.000000e+00> : vector<2x384xf32>
    %250 = tpu.matmul %239, %3, %cst_80 {dimension_numbers = #tpu.dot_dimension_numbers<[1], [0], [0], [1], [0, 0, 1, 1], [], []>} : vector<2x128xf32>, vector<128x384xf32>, vector<2x384xf32> -> vector<2x384xf32>
    %251 = vector.broadcast %4 : vector<1x384xf32> to vector<2x384xf32>
    %252 = arith.addf %250, %251 : vector<2x384xf32>
    %253 = vector.extract_strided_slice %246 {offsets = [0, 0], sizes = [2, 128], strides = [1, 1]} : vector<2x384xf32> to vector<2x128xf32>
    %254 = vector.extract_strided_slice %252 {offsets = [0, 0], sizes = [2, 128], strides = [1, 1]} : vector<2x384xf32> to vector<2x128xf32>
    %255 = arith.addf %253, %254 : vector<2x128xf32>
    %cst_81 = arith.constant 0.000000e+00 : f32
    %256 = vector.broadcast %cst_81 : f32 to vector<2x128xf32>
    %257 = arith.maximumf %255, %256 : vector<2x128xf32>
    %258 = vector.extract_strided_slice %246 {offsets = [0, 128], sizes = [2, 128], strides = [1, 1]} : vector<2x384xf32> to vector<2x128xf32>
    %259 = vector.extract_strided_slice %252 {offsets = [0, 128], sizes = [2, 128], strides = [1, 1]} : vector<2x384xf32> to vector<2x128xf32>
    %260 = arith.addf %258, %259 : vector<2x128xf32>
    %cst_82 = arith.constant 0.000000e+00 : f32
    %261 = vector.broadcast %cst_82 : f32 to vector<2x128xf32>
    %262 = arith.maximumf %260, %261 : vector<2x128xf32>
    %263 = vector.extract_strided_slice %246 {offsets = [0, 256], sizes = [2, 128], strides = [1, 1]} : vector<2x384xf32> to vector<2x128xf32>
    %264 = vector.extract_strided_slice %252 {offsets = [0, 256], sizes = [2, 128], strides = [1, 1]} : vector<2x384xf32> to vector<2x128xf32>
    %265 = arith.mulf %257, %264 : vector<2x128xf32>
    %266 = arith.addf %263, %265 : vector<2x128xf32>
    %267 = math.tanh %266 : vector<2x128xf32>
    %cst_83 = arith.constant 1.000000e+00 : f32
    %268 = vector.broadcast %cst_83 : f32 to vector<2x128xf32>
    %269 = arith.subf %268, %262 : vector<2x128xf32>
    %270 = arith.mulf %269, %239 : vector<2x128xf32>
    %271 = arith.mulf %262, %267 : vector<2x128xf32>
    %272 = arith.addf %270, %271 : vector<2x128xf32>
    %273 = arith.mulf %272, %249 : vector<2x128xf32>
    %274 = arith.index_cast %c7_i32 : i32 to index
    %c0_84 = arith.constant 0 : index
    %c0_85 = arith.constant 0 : index
    %275 = vector.load %arg6[%274, %c0_84, %c0_85] : memref<8x2x128xf32, #tpu.memory_space<vmem>>, vector<1x2x128xf32>
    %276 = vector.shape_cast %275 : vector<1x2x128xf32> to vector<2x128xf32>
    %277 = vector.shape_cast %273 : vector<2x128xf32> to vector<1x2x128xf32>
    tpu.vector_store %arg6[%274, %c0_84, %c0_85], %277 {strides = array<i32>} : memref<8x2x128xf32, #tpu.memory_space<vmem>>, vector<1x2x128xf32>,
    %c8_i32 = arith.constant 8 : i32
    %c0_86 = arith.constant 0 : index
    %c0_87 = arith.constant 0 : index
    %278 = vector.load %arg7[%c0_86, %c0_87] : memref<2x128xf32, #tpu.memory_space<vmem>>, vector<2x128xf32>
    tpu.vector_store %arg7[%c0_86, %c0_87], %273 {strides = array<i32>} : memref<2x128xf32, #tpu.memory_space<vmem>>, vector<2x128xf32>,
    return
  }
  func.func @transform_0(%arg0: i32) -> (i32, i32, i32) {
    %c0_i32 = arith.constant 0 : i32
    %c0_i32_0 = arith.constant 0 : i32
    %c0_i32_1 = arith.constant 0 : i32
    return %arg0, %c0_i32, %c0_i32_0 : i32, i32, i32
  }
  func.func @transform_1(%arg0: i32) -> (i32, i32, i32) {
    %c0_i32 = arith.constant 0 : i32
    %c0_i32_0 = arith.constant 0 : i32
    %c0_i32_1 = arith.constant 0 : i32
    return %arg0, %c0_i32, %c0_i32_0 : i32, i32, i32
  }
  func.func @transform_2(%arg0: i32) -> (i32, i32) {
    %c0_i32 = arith.constant 0 : i32
    %c0_i32_0 = arith.constant 0 : i32
    %c0_i32_1 = arith.constant 0 : i32
    return %c0_i32, %c0_i32_0 : i32, i32
  }
  func.func @transform_3(%arg0: i32) -> (i32, i32) {
    %c0_i32 = arith.constant 0 : i32
    %c0_i32_0 = arith.constant 0 : i32
    %c0_i32_1 = arith.constant 0 : i32
    return %c0_i32, %c0_i32_0 : i32, i32
  }
  func.func @transform_4(%arg0: i32) -> (i32, i32) {
    %c0_i32 = arith.constant 0 : i32
    %c0_i32_0 = arith.constant 0 : i32
    %c0_i32_1 = arith.constant 0 : i32
    return %c0_i32, %c0_i32_0 : i32, i32
  }
  func.func @transform_5(%arg0: i32) -> (i32, i32, i32) {
    %c0_i32 = arith.constant 0 : i32
    %c0_i32_0 = arith.constant 0 : i32
    %c0_i32_1 = arith.constant 0 : i32
    return %arg0, %c0_i32, %c0_i32_0 : i32, i32, i32
  }
}

</mosaic_0001>

<llo_original>
// kernel: tpu_custom_call.1
$region0: #{tpu_custom_call.1}
  #allocation0 [shape = 'u32[]', space=smem, size = 0x4, offset = 0x4, fixed_abs, tag = 'smem constant byte address 0x4 - core index']
  #allocation1 [shape = 'u32[144,128]{1,0:T(1,128)}', space=vmem, size = 0x12000, scoped, tag = 'internal scratch']
  #allocation2 [shape = 'f32[2,128]{1,0:T(2,128)}', space=vmem, size = 0x400, scoped, tag = 'scratch operand']
  %s0 = inlined_call_operand.hbm [shape: f32[8,2,384], index: 0, kind: input, shape index: {}]
  %s1 = inlined_call_operand.hbm [shape: f32[8,2,128], index: 1, kind: input, shape index: {}]
  %s2 = inlined_call_operand.vmem [shape: f32[2,128], index: 2, kind: input, shape index: {}]
  %s3 = inlined_call_operand.hbm [shape: f32[128,384], index: 3, kind: input, shape index: {}]
  %s4 = inlined_call_operand.vmem [shape: f32[1,384], index: 4, kind: input, shape index: {}]
  %s5 = inlined_call_operand.hbm [shape: f32[8,2,128], index: 5, kind: output, shape index: {}]
  %s6 = sld [smem:[#allocation0]]
  $region46: #{tpu_custom_call.1} parent=0
    _
  %s8 = ssub.s32 1, %s6
  %s9 = scalar_select 0, %s8, %s6
  $region1: #{tpu_custom_call.1} parent=0
    #allocation3 [shape = 'u8[24576]{0}', space=vmem, size = 0x6000, scoped, tag = 'input window, operand 0, single buffered']
    #allocation4 [shape = 's32[1]{0}', space=sflag, size = 0x4, scoped, tag = 'scoped memory for tpu_custom_call.1']
    #allocation5 [shape = 's32[1]{0}', space=sflag, size = 0x4, scoped, tag = 'scoped memory for tpu_custom_call.1']
    #allocation6 [shape = 'u8[8192]{0}', space=vmem, size = 0x2000, scoped, tag = 'input window, operand 1, single buffered']
    #allocation7 [shape = 's32[1]{0}', space=sflag, size = 0x4, scoped, tag = 'scoped memory for tpu_custom_call.1']
    #allocation8 [shape = 'u8[196608]{0}', space=vmem, size = 0x30000, scoped, tag = 'input window, operand 3, single buffered']
    #allocation9 [shape = 'u8[8192]{0}', space=vmem, size = 0x2000, scoped, tag = 'output window, operand 0, single buffered']
    %10 = vsyncpa [#allocation4], 0
    %11 = vsyncpa [#allocation7], 0
    %12 = vsyncpa [#allocation5], 0
    // Predicated region
    $region2: #{tpu_custom_call.1} parent=1 // pred_check
      _
    $region3: #{tpu_custom_call.1} parent=1 // pred_check_branch
      %14 = sbr.rel (0) target = $region5
    $region4: #{tpu_custom_call.1} parent=1 // pred_region
      %s16 = ssub.s32 768, 768
      %17 = vsyncadd [#allocation4], %s16
      %s18 = sshll.u32 [#allocation3], 4
      %s19 = int_to_ptr.vmem [resolvable:$true] %s18
      %24 = dma.hbm_to_vmem [thread:$0]  %s0, 768, %s19, [#allocation4], 96, 96, 6
    $region5: #{tpu_custom_call.1} parent=1 // pred_fallthru
      _
    // Predicated region
    $region6: #{tpu_custom_call.1} parent=1 // pred_check
      _
    $region7: #{tpu_custom_call.1} parent=1 // pred_check_branch
      %26 = sbr.rel (0) target = $region9
    $region8: #{tpu_custom_call.1} parent=1 // pred_region
      %s28 = ssub.s32 256, 256
      %29 = vsyncadd [#allocation7], %s28
      %s30 = sshll.u32 [#allocation6], 4
      %s31 = int_to_ptr.vmem [resolvable:$true] %s30
      %36 = dma.hbm_to_vmem [thread:$0]  %s1, 256, %s31, [#allocation7], 32, 32, 2
    $region9: #{tpu_custom_call.1} parent=1 // pred_fallthru
      _
    // Predicated region
    $region10: #{tpu_custom_call.1} parent=1 // pred_check
      _
    $region11: #{tpu_custom_call.1} parent=1 // pred_check_branch
      %38 = sbr.rel (0) target = $region13
    $region12: #{tpu_custom_call.1} parent=1 // pred_region
      _
    $region13: #{tpu_custom_call.1} parent=1 // pred_fallthru
      _
    // Predicated region
    $region14: #{tpu_custom_call.1} parent=1 // pred_check
      _
    $region15: #{tpu_custom_call.1} parent=1 // pred_check_branch
      %40 = sbr.rel (0) target = $region17
    $region16: #{tpu_custom_call.1} parent=1 // pred_region
      %s42 = ssub.s32 6144, 6144
      %43 = vsyncadd [#allocation7], %s42
      %s44 = sshll.u32 [#allocation8], 4
      %s45 = int_to_ptr.vmem [resolvable:$true] %s44
      %50 = dma.hbm_to_vmem [thread:$0]  %s3, 6144, %s45, [#allocation7], 384, 384, 24
    $region17: #{tpu_custom_call.1} parent=1 // pred_fallthru
      _
    // Predicated region
    $region18: #{tpu_custom_call.1} parent=1 // pred_check
      _
    $region19: #{tpu_custom_call.1} parent=1 // pred_check_branch
      %52 = sbr.rel (0) target = $region21
    $region20: #{tpu_custom_call.1} parent=1 // pred_region
      _
    $region21: #{tpu_custom_call.1} parent=1 // pred_fallthru
      _
    // Predicated region
    $region22: #{tpu_custom_call.1} parent=1 // pred_check
      _
    $region23: #{tpu_custom_call.1} parent=1 // pred_check_branch
      %54 = sbr.rel (0) target = $region25
    $region24: #{tpu_custom_call.1} parent=1 // pred_region
      %55 = dma.done [#allocation4], 768
    $region25: #{tpu_custom_call.1} parent=1 // pred_fallthru
      _
    // Predicated region
    $region26: #{tpu_custom_call.1} parent=1 // pred_check
      _
    $region27: #{tpu_custom_call.1} parent=1 // pred_check_branch
      %57 = sbr.rel (0) target = $region29
    $region28: #{tpu_custom_call.1} parent=1 // pred_region
      %58 = dma.done [#allocation7], 256
    $region29: #{tpu_custom_call.1} parent=1 // pred_fallthru
      _
    // Predicated region
    $region30: #{tpu_custom_call.1} parent=1 // pred_check
      _
    $region31: #{tpu_custom_call.1} parent=1 // pred_check_branch
      %60 = sbr.rel (0) target = $region33
    $region32: #{tpu_custom_call.1} parent=1 // pred_region
      %61 = dma.done [#allocation7], 6144
    $region33: #{tpu_custom_call.1} parent=1 // pred_fallthru
      _
    %p62 = scmp.eq.s32.totalorder 0, 0
    // Predicated region
    $region34: #{tpu_custom_call.1} parent=1 // pred_check
      %p63 = pneg %p62
    $region35: #{tpu_custom_call.1} parent=1 // pred_check_branch
      %65 = sbr.rel (%p63) target = $region37
    $region36: #{tpu_custom_call.1} parent=1 // pred_region
      %v66 = vld [vmem:[%s2] sm:$0x3]
      %67 = vst [vmem:[#allocation2] sm:$0x3] %v66
    $region37: #{tpu_custom_call.1} parent=1 // pred_fallthru
      _
    %v68 = vld [vmem:[#allocation8] sm:$0xff]
    %v69 = vld [vmem:[#allocation8 + $0x8] sm:$0xff]
    %v70 = vld [vmem:[#allocation8 + $0x10] sm:$0xff]
    %v71 = vld [vmem:[#allocation8 + $0x18] sm:$0xff]
    %v72 = vld [vmem:[#allocation8 + $0x20] sm:$0xff]
    %v73 = vld [vmem:[#allocation8 + $0x28] sm:$0xff]
    %v74 = vld [vmem:[#allocation8 + $0x30] sm:$0xff]
    %v75 = vld [vmem:[#allocation8 + $0x38] sm:$0xff]
    %v76 = vld [vmem:[#allocation8 + $0x40] sm:$0xff]
    %v77 = vld [vmem:[#allocation8 + $0x48] sm:$0xff]
    %v78 = vld [vmem:[#allocation8 + $0x50] sm:$0xff]
    %v79 = vld [vmem:[#allocation8 + $0x58] sm:$0xff]
    %v80 = vld [vmem:[#allocation8 + $0x60] sm:$0xff]
    %v81 = vld [vmem:[#allocation8 + $0x68] sm:$0xff]
    %v82 = vld [vmem:[#allocation8 + $0x70] sm:$0xff]
    %v83 = vld [vmem:[#allocation8 + $0x78] sm:$0xff]
    %v84 = vld [vmem:[#allocation8 + $0x80] sm:$0xff]
    %v85 = vld [vmem:[#allocation8 + $0x88] sm:$0xff]
    %v86 = vld [vmem:[#allocation8 + $0x90] sm:$0xff]
    %v87 = vld [vmem:[#allocation8 + $0x98] sm:$0xff]
    %v88 = vld [vmem:[#allocation8 + $0xa0] sm:$0xff]
    %v89 = vld [vmem:[#allocation8 + $0xa8] sm:$0xff]
    %v90 = vld [vmem:[#allocation8 + $0xb0] sm:$0xff]
    %v91 = vld [vmem:[#allocation8 + $0xb8] sm:$0xff]
    %v92 = vld [vmem:[#allocation8 + $0xc0] sm:$0xff]
    %v93 = vld [vmem:[#allocation8 + $0xc8] sm:$0xff]
    %v94 = vld [vmem:[#allocation8 + $0xd0] sm:$0xff]
    %v95 = vld [vmem:[#allocation8 + $0xd8] sm:$0xff]
    %v96 = vld [vmem:[#allocation8 + $0xe0] sm:$0xff]
    %v97 = vld [vmem:[#allocation8 + $0xe8] sm:$0xff]
    %v98 = vld [vmem:[#allocation8 + $0xf0] sm:$0xff]
    %v99 = vld [vmem:[#allocation8 + $0xf8] sm:$0xff]
    %v100 = vld [vmem:[#allocation8 + $0x100] sm:$0xff]
    %v101 = vld [vmem:[#allocation8 + $0x108] sm:$0xff]
    %v102 = vld [vmem:[#allocation8 + $0x110] sm:$0xff]
    %v103 = vld [vmem:[#allocation8 + $0x118] sm:$0xff]
    %v104 = vld [vmem:[#allocation8 + $0x120] sm:$0xff]
    %v105 = vld [vmem:[#allocation8 + $0x128] sm:$0xff]
    %v106 = vld [vmem:[#allocation8 + $0x130] sm:$0xff]
    %v107 = vld [vmem:[#allocation8 + $0x138] sm:$0xff]
    %v108 = vld [vmem:[#allocation8 + $0x140] sm:$0xff]
    %v109 = vld [vmem:[#allocation8 + $0x148] sm:$0xff]
    %v110 = vld [vmem:[#allocation8 + $0x150] sm:$0xff]
    %v111 = vld [vmem:[#allocation8 + $0x158] sm:$0xff]
    %v112 = vld [vmem:[#allocation8 + $0x160] sm:$0xff]
    %v113 = vld [vmem:[#allocation8 + $0x168] sm:$0xff]
    %v114 = vld [vmem:[#allocation8 + $0x170] sm:$0xff]
    %v115 = vld [vmem:[#allocation8 + $0x178] sm:$0xff]
    %v116 = vld [vmem:[%s4] sm:$0x7]
    %v117 = vld [vmem:[#allocation2] sm:$0x3]
    %v118 = vld [vmem:[#allocation3] sm:$0x3f]
    %v119 = vld [vmem:[#allocation6] sm:$0x3]
    %v121 = vlaneseq
    %v122 = vshrl.u32 %v121, 7
    %v123 = vsub.s32 0, %v122
    %v124 = vrot.slane %v116, %v123
    %v125 = vlaneseq
    %v126 = vshrl.u32 %v125, 7
    %v127 = vsub.s32 1, %v126
    %v128 = vrot.slane %v116, %v127
    %v129 = vlaneseq
    %v130 = vshrl.u32 %v129, 7
    %v131 = vsub.s32 2, %v130
    %v132 = vrot.slane %v116, %v131
    %136 = vmatprep.subr.mxu0 %v114
    %137 = vmatpush1.msra.mxu0 %v113
    %138 = vmatprep.subr.mxu0 %v111
    %139 = vmatpush1.msra.mxu0 %v110
    %140 = vmatprep.subr.mxu0 %v108
    %141 = vmatpush1.msra.mxu0 %v107
    %142 = vmatprep.subr.mxu0 %v105
    %143 = vmatpush1.msra.mxu0 %v104
    %144 = vmatprep.subr.mxu0 %v102
    %145 = vmatpush1.msra.mxu0 %v101
    %146 = vmatprep.subr.mxu0 %v99
    %147 = vmatpush1.msra.mxu0 %v98
    %148 = vmatprep.subr.mxu0 %v96
    %149 = vmatpush1.msra.mxu0 %v95
    %150 = vmatprep.subr.mxu0 %v93
    %151 = vmatpush1.msra.mxu0 %v92
    %152 = vmatprep.subr.mxu0 %v90
    %153 = vmatpush1.msra.mxu0 %v89
    %154 = vmatprep.subr.mxu0 %v87
    %155 = vmatpush1.msra.mxu0 %v86
    %156 = vmatprep.subr.mxu0 %v84
    %157 = vmatpush1.msra.mxu0 %v83
    %158 = vmatprep.subr.mxu0 %v81
    %159 = vmatpush1.msra.mxu0 %v80
    %160 = vmatprep.subr.mxu0 %v78
    %161 = vmatpush1.msra.mxu0 %v77
    %162 = vmatprep.subr.mxu0 %v75
    %163 = vmatpush1.msra.mxu0 %v74
    %164 = vmatprep.subr.mxu0 %v72
    %165 = vmatpush1.msra.mxu0 %v71
    %166 = vmatprep.subr.mxu0 %v69
    %167 = vmatpush1.msra.mxu0 %v68
    %168 = vmatprep.subr.mxu0 0.0
    %169 = vmatpush2.msra.mxu0 0.0
    %170 = vmatprep.subr.mxu0 0.0
    %171 = vmatpush2.msra.mxu0 0.0
    %172 = vmatprep.subr.mxu0 0.0
    %173 = vmatpush2.msra.mxu0 0.0
    %174 = vmatprep.subr.mxu0 0.0
    %175 = vmatpush2.msra.mxu0 0.0
    %176 = vmatprep.subr.mxu0 0.0
    %177 = vmatpush2.msra.mxu0 0.0
    %178 = vmatprep.subr.mxu0 0.0
    %179 = vmatpush2.msra.mxu0 0.0
    %180 = vmatprep.subr.mxu0 0.0
    %181 = vmatpush2.msra.mxu0 0.0
    %182 = vmatprep.subr.mxu0 0.0
    %183 = vmatpush2.msra.mxu0 0.0
    %184 = vmatprep.subr.mxu0 0.0
    %185 = vmatpush2.msra.mxu0 0.0
    %186 = vmatprep.subr.mxu0 0.0
    %187 = vmatpush2.msra.mxu0 0.0
    %188 = vmatprep.subr.mxu0 0.0
    %189 = vmatpush2.msra.mxu0 0.0
    %190 = vmatprep.subr.mxu0 0.0
    %191 = vmatpush2.msra.mxu0 0.0
    %192 = vmatprep.subr.mxu0 0.0
    %193 = vmatpush2.msra.mxu0 0.0
    %194 = vmatprep.subr.mxu0 0.0
    %195 = vmatpush2.msra.mxu0 0.0
    %196 = vmatprep.subr.mxu0 0.0
    %197 = vmatpush2.msra.mxu0 0.0
    %198 = vmatprep.subr.mxu0 0.0
    %199 = vmatpush2.msra.mxu0 0.0
    %200 = vmatprep.mubr.f32.mxu0 0.0
    %201 = vmatmul.mubr.f32.gmra.mxu0 %v117
    %v202 = vpop.f32.mrf.mxu0
    %v203 = vadd.f32 %v124, %v202
    %v204 = vpop.f32.mrf.mxu0
    %v205 = vadd.f32 %v128, %v204
    %206 = vdwg.mxu0
    %207 = vmatprep.subr.mxu0 0.0
    %208 = vmatpush1.msra.mxu0 %v115
    %209 = vmatprep.subr.mxu0 0.0
    %210 = vmatpush1.msra.mxu0 %v112
    %211 = vmatprep.subr.mxu0 0.0
    %212 = vmatpush1.msra.mxu0 %v109
    %213 = vmatprep.subr.mxu0 0.0
    %214 = vmatpush1.msra.mxu0 %v106
    %215 = vmatprep.subr.mxu0 0.0
    %216 = vmatpush1.msra.mxu0 %v103
    %217 = vmatprep.subr.mxu0 0.0
    %218 = vmatpush1.msra.mxu0 %v100
    %219 = vmatprep.subr.mxu0 0.0
    %220 = vmatpush1.msra.mxu0 %v97
    %221 = vmatprep.subr.mxu0 0.0
    %222 = vmatpush1.msra.mxu0 %v94
    %223 = vmatprep.subr.mxu0 0.0
    %224 = vmatpush1.msra.mxu0 %v91
    %225 = vmatprep.subr.mxu0 0.0
    %226 = vmatpush1.msra.mxu0 %v88
    %227 = vmatprep.subr.mxu0 0.0
    %228 = vmatpush1.msra.mxu0 %v85
    %229 = vmatprep.subr.mxu0 0.0
    %230 = vmatpush1.msra.mxu0 %v82
    %231 = vmatprep.subr.mxu0 0.0
    %232 = vmatpush1.msra.mxu0 %v79
    %233 = vmatprep.subr.mxu0 0.0
    %234 = vmatpush1.msra.mxu0 %v76
    %235 = vmatprep.subr.mxu0 0.0
    %236 = vmatpush1.msra.mxu0 %v73
    %237 = vmatprep.subr.mxu0 0.0
    %238 = vmatpush1.msra.mxu0 %v70
    %239 = vmatprep.subr.mxu0 0.0
    %240 = vmatpush2.msra.mxu0 0.0
    %241 = vmatprep.subr.mxu0 0.0
    %242 = vmatpush2.msra.mxu0 0.0
    %243 = vmatprep.subr.mxu0 0.0
    %244 = vmatpush2.msra.mxu0 0.0
    %245 = vmatprep.subr.mxu0 0.0
    %246 = vmatpush2.msra.mxu0 0.0
    %247 = vmatprep.subr.mxu0 0.0
    %248 = vmatpush2.msra.mxu0 0.0
    %249 = vmatprep.subr.mxu0 0.0
    %250 = vmatpush2.msra.mxu0 0.0
    %251 = vmatprep.subr.mxu0 0.0
    %252 = vmatpush2.msra.mxu0 0.0
    %253 = vmatprep.subr.mxu0 0.0
    %254 = vmatpush2.msra.mxu0 0.0
    %255 = vmatprep.subr.mxu0 0.0
    %256 = vmatpush2.msra.mxu0 0.0
    %257 = vmatprep.subr.mxu0 0.0
    %258 = vmatpush2.msra.mxu0 0.0
    %259 = vmatprep.subr.mxu0 0.0
    %260 = vmatpush2.msra.mxu0 0.0
    %261 = vmatprep.subr.mxu0 0.0
    %262 = vmatpush2.msra.mxu0 0.0
    %263 = vmatprep.subr.mxu0 0.0
    %264 = vmatpush2.msra.mxu0 0.0
    %265 = vmatprep.subr.mxu0 0.0
    %266 = vmatpush2.msra.mxu0 0.0
    %267 = vmatprep.subr.mxu0 0.0
    %268 = vmatpush2.msra.mxu0 0.0
    %269 = vmatprep.subr.mxu0 0.0
    %270 = vmatpush2.msra.mxu0 0.0
    %271 = vmatprep.mubr.f32.mxu0 0.0
    %272 = vmatmul.mubr.f32.gmra.mxu0 %v117
    %v273 = vpop.f32.mrf.mxu0
    %v274 = vadd.f32 %v132, %v273
    %v275 = vpop.f32.mrf.mxu0
    %276 = vdwg.mxu0
    %v277 = vadd.f32 %v118, %v203
    %v278 = vmax.f32 %v277, 0.0
    %v280 = vrot.slane %v118, 2
    %v282 = vadd.f32 %v280, %v205
    %v283 = vmax.f32 %v282, 0.0
    %v284 = vmul.f32 %v278, %v274
    %v285 = vrot.slane %v118, 4
    %v287 = vadd.f32 %v285, %v284
    %v288 = vtanh.pop %v287
    %v289 = vsub.f32 1.0, %v283
    %v290 = vmul.f32 %v289, %v117
    %v291 = vmul.f32 %v283, %v288
    %v292 = vadd.f32 %v290, %v291
    %v293 = vmul.f32 %v292, %v119
    %294 = vst [vmem:[#allocation9] sm:$0x3] %v293
    %s295 = scalar_lea.vmem [#allocation3], 6
    %v296 = vld [vmem:[%s295] sm:$0x3f]
    %s297 = scalar_lea.vmem [#allocation6], 2
    %v298 = vld [vmem:[%s297] sm:$0x3]
    %299 = vmatprep.subr.mxu0 %v114
    %300 = vmatpush1.msra.mxu0 %v113
    %301 = vmatprep.subr.mxu0 %v111
    %302 = vmatpush1.msra.mxu0 %v110
    %303 = vmatprep.subr.mxu0 %v108
    %304 = vmatpush1.msra.mxu0 %v107
    %305 = vmatprep.subr.mxu0 %v105
    %306 = vmatpush1.msra.mxu0 %v104
    %307 = vmatprep.subr.mxu0 %v102
    %308 = vmatpush1.msra.mxu0 %v101
    %309 = vmatprep.subr.mxu0 %v99
    %310 = vmatpush1.msra.mxu0 %v98
    %311 = vmatprep.subr.mxu0 %v96
    %312 = vmatpush1.msra.mxu0 %v95
    %313 = vmatprep.subr.mxu0 %v93
    %314 = vmatpush1.msra.mxu0 %v92
    %315 = vmatprep.subr.mxu0 %v90
    %316 = vmatpush1.msra.mxu0 %v89
    %317 = vmatprep.subr.mxu0 %v87
    %318 = vmatpush1.msra.mxu0 %v86
    %319 = vmatprep.subr.mxu0 %v84
    %320 = vmatpush1.msra.mxu0 %v83
    %321 = vmatprep.subr.mxu0 %v81
    %322 = vmatpush1.msra.mxu0 %v80
    %323 = vmatprep.subr.mxu0 %v78
    %324 = vmatpush1.msra.mxu0 %v77
    %325 = vmatprep.subr.mxu0 %v75
    %326 = vmatpush1.msra.mxu0 %v74
    %327 = vmatprep.subr.mxu0 %v72
    %328 = vmatpush1.msra.mxu0 %v71
    %329 = vmatprep.subr.mxu0 %v69
    %330 = vmatpush1.msra.mxu0 %v68
    %331 = vmatprep.subr.mxu0 0.0
    %332 = vmatpush2.msra.mxu0 0.0
    %333 = vmatprep.subr.mxu0 0.0
    %334 = vmatpush2.msra.mxu0 0.0
    %335 = vmatprep.subr.mxu0 0.0
    %336 = vmatpush2.msra.mxu0 0.0
    %337 = vmatprep.subr.mxu0 0.0
    %338 = vmatpush2.msra.mxu0 0.0
    %339 = vmatprep.subr.mxu0 0.0
    %340 = vmatpush2.msra.mxu0 0.0
    %341 = vmatprep.subr.mxu0 0.0
    %342 = vmatpush2.msra.mxu0 0.0
    %343 = vmatprep.subr.mxu0 0.0
    %344 = vmatpush2.msra.mxu0 0.0
    %345 = vmatprep.subr.mxu0 0.0
    %346 = vmatpush2.msra.mxu0 0.0
    %347 = vmatprep.subr.mxu0 0.0
    %348 = vmatpush2.msra.mxu0 0.0
    %349 = vmatprep.subr.mxu0 0.0
    %350 = vmatpush2.msra.mxu0 0.0
    %351 = vmatprep.subr.mxu0 0.0
    %352 = vmatpush2.msra.mxu0 0.0
    %353 = vmatprep.subr.mxu0 0.0
    %354 = vmatpush2.msra.mxu0 0.0
    %355 = vmatprep.subr.mxu0 0.0
    %356 = vmatpush2.msra.mxu0 0.0
    %357 = vmatprep.subr.mxu0 0.0
    %358 = vmatpush2.msra.mxu0 0.0
    %359 = vmatprep.subr.mxu0 0.0
    %360 = vmatpush2.msra.mxu0 0.0
    %361 = vmatprep.subr.mxu0 0.0
    %362 = vmatpush2.msra.mxu0 0.0
    %363 = vmatprep.mubr.f32.mxu0 0.0
    %364 = vmatmul.mubr.f32.gmra.mxu0 %v293
    %v365 = vpop.f32.mrf.mxu0
    %v366 = vadd.f32 %v124, %v365
    %v367 = vpop.f32.mrf.mxu0
    %v368 = vadd.f32 %v128, %v367
    %369 = vdwg.mxu0
    %370 = vmatprep.subr.mxu0 0.0
    %371 = vmatpush1.msra.mxu0 %v115
    %372 = vmatprep.subr.mxu0 0.0
    %373 = vmatpush1.msra.mxu0 %v112
    %374 = vmatprep.subr.mxu0 0.0
    %375 = vmatpush1.msra.mxu0 %v109
    %376 = vmatprep.subr.mxu0 0.0
    %377 = vmatpush1.msra.mxu0 %v106
    %378 = vmatprep.subr.mxu0 0.0
    %379 = vmatpush1.msra.mxu0 %v103
    %380 = vmatprep.subr.mxu0 0.0
    %381 = vmatpush1.msra.mxu0 %v100
    %382 = vmatprep.subr.mxu0 0.0
    %383 = vmatpush1.msra.mxu0 %v97
    %384 = vmatprep.subr.mxu0 0.0
    %385 = vmatpush1.msra.mxu0 %v94
    %386 = vmatprep.subr.mxu0 0.0
    %387 = vmatpush1.msra.mxu0 %v91
    %388 = vmatprep.subr.mxu0 0.0
    %389 = vmatpush1.msra.mxu0 %v88
    %390 = vmatprep.subr.mxu0 0.0
    %391 = vmatpush1.msra.mxu0 %v85
    %392 = vmatprep.subr.mxu0 0.0
    %393 = vmatpush1.msra.mxu0 %v82
    %394 = vmatprep.subr.mxu0 0.0
    %395 = vmatpush1.msra.mxu0 %v79
    %396 = vmatprep.subr.mxu0 0.0
    %397 = vmatpush1.msra.mxu0 %v76
    %398 = vmatprep.subr.mxu0 0.0
    %399 = vmatpush1.msra.mxu0 %v73
    %400 = vmatprep.subr.mxu0 0.0
    %401 = vmatpush1.msra.mxu0 %v70
    %402 = vmatprep.subr.mxu0 0.0
    %403 = vmatpush2.msra.mxu0 0.0
    %404 = vmatprep.subr.mxu0 0.0
    %405 = vmatpush2.msra.mxu0 0.0
    %406 = vmatprep.subr.mxu0 0.0
    %407 = vmatpush2.msra.mxu0 0.0
    %408 = vmatprep.subr.mxu0 0.0
    %409 = vmatpush2.msra.mxu0 0.0
    %410 = vmatprep.subr.mxu0 0.0
    %411 = vmatpush2.msra.mxu0 0.0
    %412 = vmatprep.subr.mxu0 0.0
    %413 = vmatpush2.msra.mxu0 0.0
    %414 = vmatprep.subr.mxu0 0.0
    %415 = vmatpush2.msra.mxu0 0.0
    %416 = vmatprep.subr.mxu0 0.0
    %417 = vmatpush2.msra.mxu0 0.0
    %418 = vmatprep.subr.mxu0 0.0
    %419 = vmatpush2.msra.mxu0 0.0
    %420 = vmatprep.subr.mxu0 0.0
    %421 = vmatpush2.msra.mxu0 0.0
    %422 = vmatprep.subr.mxu0 0.0
    %423 = vmatpush2.msra.mxu0 0.0
    %424 = vmatprep.subr.mxu0 0.0
    %425 = vmatpush2.msra.mxu0 0.0
    %426 = vmatprep.subr.mxu0 0.0
    %427 = vmatpush2.msra.mxu0 0.0
    %428 = vmatprep.subr.mxu0 0.0
    %429 = vmatpush2.msra.mxu0 0.0
    %430 = vmatprep.subr.mxu0 0.0
    %431 = vmatpush2.msra.mxu0 0.0
    %432 = vmatprep.subr.mxu0 0.0
    %433 = vmatpush2.msra.mxu0 0.0
    %434 = vmatprep.mubr.f32.mxu0 0.0
    %435 = vmatmul.mubr.f32.gmra.mxu0 %v293
    %v436 = vpop.f32.mrf.mxu0
    %v437 = vadd.f32 %v132, %v436
    %v438 = vpop.f32.mrf.mxu0
    %439 = vdwg.mxu0
    %v440 = vadd.f32 %v296, %v366
    %v441 = vmax.f32 %v440, 0.0
    %v443 = vrot.slane %v296, 2
    %v445 = vadd.f32 %v443, %v368
    %v446 = vmax.f32 %v445, 0.0
    %v447 = vmul.f32 %v441, %v437
    %v448 = vrot.slane %v296, 4
    %v450 = vadd.f32 %v448, %v447
    %v451 = vtanh.pop %v450
    %v452 = vsub.f32 1.0, %v446
    %v453 = vmul.f32 %v452, %v293
    %v454 = vmul.f32 %v446, %v451
    %v455 = vadd.f32 %v453, %v454
    %v456 = vmul.f32 %v455, %v298
    %s457 = scalar_lea.vmem [#allocation9], 2
    %458 = vst [vmem:[%s457] sm:$0x3] %v456
    %s459 = scalar_lea.vmem [#allocation3], 12
    %v460 = vld [vmem:[%s459] sm:$0x3f]
    %s461 = scalar_lea.vmem [#allocation6], 4
    %v462 = vld [vmem:[%s461] sm:$0x3]
    %463 = vmatprep.subr.mxu0 %v114
    %464 = vmatpush1.msra.mxu0 %v113
    %465 = vmatprep.subr.mxu0 %v111
    %466 = vmatpush1.msra.mxu0 %v110
    %467 = vmatprep.subr.mxu0 %v108
    %468 = vmatpush1.msra.mxu0 %v107
    %469 = vmatprep.subr.mxu0 %v105
    %470 = vmatpush1.msra.mxu0 %v104
    %471 = vmatprep.subr.mxu0 %v102
    %472 = vmatpush1.msra.mxu0 %v101
    %473 = vmatprep.subr.mxu0 %v99
    %474 = vmatpush1.msra.mxu0 %v98
    %475 = vmatprep.subr.mxu0 %v96
    %476 = vmatpush1.msra.mxu0 %v95
    %477 = vmatprep.subr.mxu0 %v93
    %478 = vmatpush1.msra.mxu0 %v92
    %479 = vmatprep.subr.mxu0 %v90
    %480 = vmatpush1.msra.mxu0 %v89
    %481 = vmatprep.subr.mxu0 %v87
    %482 = vmatpush1.msra.mxu0 %v86
    %483 = vmatprep.subr.mxu0 %v84
    %484 = vmatpush1.msra.mxu0 %v83
    %485 = vmatprep.subr.mxu0 %v81
    %486 = vmatpush1.msra.mxu0 %v80
    %487 = vmatprep.subr.mxu0 %v78
    %488 = vmatpush1.msra.mxu0 %v77
    %489 = vmatprep.subr.mxu0 %v75
    %490 = vmatpush1.msra.mxu0 %v74
    %491 = vmatprep.subr.mxu0 %v72
    %492 = vmatpush1.msra.mxu0 %v71
    %493 = vmatprep.subr.mxu0 %v69
    %494 = vmatpush1.msra.mxu0 %v68
    %495 = vmatprep.subr.mxu0 0.0
    %496 = vmatpush2.msra.mxu0 0.0
    %497 = vmatprep.subr.mxu0 0.0
    %498 = vmatpush2.msra.mxu0 0.0
    %499 = vmatprep.subr.mxu0 0.0
    %500 = vmatpush2.msra.mxu0 0.0
    %501 = vmatprep.subr.mxu0 0.0
    %502 = vmatpush2.msra.mxu0 0.0
    %503 = vmatprep.subr.mxu0 0.0
    %504 = vmatpush2.msra.mxu0 0.0
    %505 = vmatprep.subr.mxu0 0.0
    %506 = vmatpush2.msra.mxu0 0.0
    %507 = vmatprep.subr.mxu0 0.0
    %508 = vmatpush2.msra.mxu0 0.0
    %509 = vmatprep.subr.mxu0 0.0
    %510 = vmatpush2.msra.mxu0 0.0
    %511 = vmatprep.subr.mxu0 0.0
    %512 = vmatpush2.msra.mxu0 0.0
    %513 = vmatprep.subr.mxu0 0.0
    %514 = vmatpush2.msra.mxu0 0.0
    %515 = vmatprep.subr.mxu0 0.0
    %516 = vmatpush2.msra.mxu0 0.0
    %517 = vmatprep.subr.mxu0 0.0
    %518 = vmatpush2.msra.mxu0 0.0
    %519 = vmatprep.subr.mxu0 0.0
    %520 = vmatpush2.msra.mxu0 0.0
    %521 = vmatprep.subr.mxu0 0.0
    %522 = vmatpush2.msra.mxu0 0.0
    %523 = vmatprep.subr.mxu0 0.0
    %524 = vmatpush2.msra.mxu0 0.0
    %525 = vmatprep.subr.mxu0 0.0
    %526 = vmatpush2.msra.mxu0 0.0
    %527 = vmatprep.mubr.f32.mxu0 0.0
    %528 = vmatmul.mubr.f32.gmra.mxu0 %v456
    %v529 = vpop.f32.mrf.mxu0
    %v530 = vadd.f32 %v124, %v529
    %v531 = vpop.f32.mrf.mxu0
    %v532 = vadd.f32 %v128, %v531
    %533 = vdwg.mxu0
    %534 = vmatprep.subr.mxu0 0.0
    %535 = vmatpush1.msra.mxu0 %v115
    %536 = vmatprep.subr.mxu0 0.0
    %537 = vmatpush1.msra.mxu0 %v112
    %538 = vmatprep.subr.mxu0 0.0
    %539 = vmatpush1.msra.mxu0 %v109
    %540 = vmatprep.subr.mxu0 0.0
    %541 = vmatpush1.msra.mxu0 %v106
    %542 = vmatprep.subr.mxu0 0.0
    %543 = vmatpush1.msra.mxu0 %v103
    %544 = vmatprep.subr.mxu0 0.0
    %545 = vmatpush1.msra.mxu0 %v100
    %546 = vmatprep.subr.mxu0 0.0
    %547 = vmatpush1.msra.mxu0 %v97
    %548 = vmatprep.subr.mxu0 0.0
    %549 = vmatpush1.msra.mxu0 %v94
    %550 = vmatprep.subr.mxu0 0.0
    %551 = vmatpush1.msra.mxu0 %v91
    %552 = vmatprep.subr.mxu0 0.0
    %553 = vmatpush1.msra.mxu0 %v88
    %554 = vmatprep.subr.mxu0 0.0
    %555 = vmatpush1.msra.mxu0 %v85
    %556 = vmatprep.subr.mxu0 0.0
    %557 = vmatpush1.msra.mxu0 %v82
    %558 = vmatprep.subr.mxu0 0.0
    %559 = vmatpush1.msra.mxu0 %v79
    %560 = vmatprep.subr.mxu0 0.0
    %561 = vmatpush1.msra.mxu0 %v76
    %562 = vmatprep.subr.mxu0 0.0
    %563 = vmatpush1.msra.mxu0 %v73
    %564 = vmatprep.subr.mxu0 0.0
    %565 = vmatpush1.msra.mxu0 %v70
    %566 = vmatprep.subr.mxu0 0.0
    %567 = vmatpush2.msra.mxu0 0.0
    %568 = vmatprep.subr.mxu0 0.0
    %569 = vmatpush2.msra.mxu0 0.0
    %570 = vmatprep.subr.mxu0 0.0
    %571 = vmatpush2.msra.mxu0 0.0
    %572 = vmatprep.subr.mxu0 0.0
    %573 = vmatpush2.msra.mxu0 0.0
    %574 = vmatprep.subr.mxu0 0.0
    %575 = vmatpush2.msra.mxu0 0.0
    %576 = vmatprep.subr.mxu0 0.0
    %577 = vmatpush2.msra.mxu0 0.0
    %578 = vmatprep.subr.mxu0 0.0
    %579 = vmatpush2.msra.mxu0 0.0
    %580 = vmatprep.subr.mxu0 0.0
    %581 = vmatpush2.msra.mxu0 0.0
    %582 = vmatprep.subr.mxu0 0.0
    %583 = vmatpush2.msra.mxu0 0.0
    %584 = vmatprep.subr.mxu0 0.0
    %585 = vmatpush2.msra.mxu0 0.0
    %586 = vmatprep.subr.mxu0 0.0
    %587 = vmatpush2.msra.mxu0 0.0
    %588 = vmatprep.subr.mxu0 0.0
    %589 = vmatpush2.msra.mxu0 0.0
    %590 = vmatprep.subr.mxu0 0.0
    %591 = vmatpush2.msra.mxu0 0.0
    %592 = vmatprep.subr.mxu0 0.0
    %593 = vmatpush2.msra.mxu0 0.0
    %594 = vmatprep.subr.mxu0 0.0
    %595 = vmatpush2.msra.mxu0 0.0
    %596 = vmatprep.subr.mxu0 0.0
    %597 = vmatpush2.msra.mxu0 0.0
    %598 = vmatprep.mubr.f32.mxu0 0.0
    %599 = vmatmul.mubr.f32.gmra.mxu0 %v456
    %v600 = vpop.f32.mrf.mxu0
    %v601 = vadd.f32 %v132, %v600
    %v602 = vpop.f32.mrf.mxu0
    %603 = vdwg.mxu0
    %v604 = vadd.f32 %v460, %v530
    %v605 = vmax.f32 %v604, 0.0
    %v607 = vrot.slane %v460, 2
    %v609 = vadd.f32 %v607, %v532
    %v610 = vmax.f32 %v609, 0.0
    %v611 = vmul.f32 %v605, %v601
    %v612 = vrot.slane %v460, 4
    %v614 = vadd.f32 %v612, %v611
    %v615 = vtanh.pop %v614
    %v616 = vsub.f32 1.0, %v610
    %v617 = vmul.f32 %v616, %v456
    %v618 = vmul.f32 %v610, %v615
    %v619 = vadd.f32 %v617, %v618
    %v620 = vmul.f32 %v619, %v462
    %s621 = scalar_lea.vmem [#allocation9], 4
    %622 = vst [vmem:[%s621] sm:$0x3] %v620
    %s623 = scalar_lea.vmem [#allocation3], 18
    %v624 = vld [vmem:[%s623] sm:$0x3f]
    %s625 = scalar_lea.vmem [#allocation6], 6
    %v626 = vld [vmem:[%s625] sm:$0x3]
    %627 = vmatprep.subr.mxu0 %v114
    %628 = vmatpush1.msra.mxu0 %v113
    %629 = vmatprep.subr.mxu0 %v111
    %630 = vmatpush1.msra.mxu0 %v110
    %631 = vmatprep.subr.mxu0 %v108
    %632 = vmatpush1.msra.mxu0 %v107
    %633 = vmatprep.subr.mxu0 %v105
    %634 = vmatpush1.msra.mxu0 %v104
    %635 = vmatprep.subr.mxu0 %v102
    %636 = vmatpush1.msra.mxu0 %v101
    %637 = vmatprep.subr.mxu0 %v99
    %638 = vmatpush1.msra.mxu0 %v98
    %639 = vmatprep.subr.mxu0 %v96
    %640 = vmatpush1.msra.mxu0 %v95
    %641 = vmatprep.subr.mxu0 %v93
    %642 = vmatpush1.msra.mxu0 %v92
    %643 = vmatprep.subr.mxu0 %v90
    %644 = vmatpush1.msra.mxu0 %v89
    %645 = vmatprep.subr.mxu0 %v87
    %646 = vmatpush1.msra.mxu0 %v86
    %647 = vmatprep.subr.mxu0 %v84
    %648 = vmatpush1.msra.mxu0 %v83
    %649 = vmatprep.subr.mxu0 %v81
    %650 = vmatpush1.msra.mxu0 %v80
    %651 = vmatprep.subr.mxu0 %v78
    %652 = vmatpush1.msra.mxu0 %v77
    %653 = vmatprep.subr.mxu0 %v75
    %654 = vmatpush1.msra.mxu0 %v74
    %655 = vmatprep.subr.mxu0 %v72
    %656 = vmatpush1.msra.mxu0 %v71
    %657 = vmatprep.subr.mxu0 %v69
    %658 = vmatpush1.msra.mxu0 %v68
    %659 = vmatprep.subr.mxu0 0.0
    %660 = vmatpush2.msra.mxu0 0.0
    %661 = vmatprep.subr.mxu0 0.0
    %662 = vmatpush2.msra.mxu0 0.0
    %663 = vmatprep.subr.mxu0 0.0
    %664 = vmatpush2.msra.mxu0 0.0
    %665 = vmatprep.subr.mxu0 0.0
    %666 = vmatpush2.msra.mxu0 0.0
    %667 = vmatprep.subr.mxu0 0.0
    %668 = vmatpush2.msra.mxu0 0.0
    %669 = vmatprep.subr.mxu0 0.0
    %670 = vmatpush2.msra.mxu0 0.0
    %671 = vmatprep.subr.mxu0 0.0
    %672 = vmatpush2.msra.mxu0 0.0
    %673 = vmatprep.subr.mxu0 0.0
    %674 = vmatpush2.msra.mxu0 0.0
    %675 = vmatprep.subr.mxu0 0.0
    %676 = vmatpush2.msra.mxu0 0.0
    %677 = vmatprep.subr.mxu0 0.0
    %678 = vmatpush2.msra.mxu0 0.0
    %679 = vmatprep.subr.mxu0 0.0
    %680 = vmatpush2.msra.mxu0 0.0
    %681 = vmatprep.subr.mxu0 0.0
    %682 = vmatpush2.msra.mxu0 0.0
    %683 = vmatprep.subr.mxu0 0.0
    %684 = vmatpush2.msra.mxu0 0.0
    %685 = vmatprep.subr.mxu0 0.0
    %686 = vmatpush2.msra.mxu0 0.0
    %687 = vmatprep.subr.mxu0 0.0
    %688 = vmatpush2.msra.mxu0 0.0
    %689 = vmatprep.subr.mxu0 0.0
    %690 = vmatpush2.msra.mxu0 0.0
    %691 = vmatprep.mubr.f32.mxu0 0.0
    %692 = vmatmul.mubr.f32.gmra.mxu0 %v620
    %v693 = vpop.f32.mrf.mxu0
    %v694 = vadd.f32 %v124, %v693
    %v695 = vpop.f32.mrf.mxu0
    %v696 = vadd.f32 %v128, %v695
    %697 = vdwg.mxu0
    %698 = vmatprep.subr.mxu0 0.0
    %699 = vmatpush1.msra.mxu0 %v115
    %700 = vmatprep.subr.mxu0 0.0
    %701 = vmatpush1.msra.mxu0 %v112
    %702 = vmatprep.subr.mxu0 0.0
    %703 = vmatpush1.msra.mxu0 %v109
    %704 = vmatprep.subr.mxu0 0.0
    %705 = vmatpush1.msra.mxu0 %v106
    %706 = vmatprep.subr.mxu0 0.0
    %707 = vmatpush1.msra.mxu0 %v103
    %708 = vmatprep.subr.mxu0 0.0
    %709 = vmatpush1.msra.mxu0 %v100
    %710 = vmatprep.subr.mxu0 0.0
    %711 = vmatpush1.msra.mxu0 %v97
    %712 = vmatprep.subr.mxu0 0.0
    %713 = vmatpush1.msra.mxu0 %v94
    %714 = vmatprep.subr.mxu0 0.0
    %715 = vmatpush1.msra.mxu0 %v91
    %716 = vmatprep.subr.mxu0 0.0
    %717 = vmatpush1.msra.mxu0 %v88
    %718 = vmatprep.subr.mxu0 0.0
    %719 = vmatpush1.msra.mxu0 %v85
    %720 = vmatprep.subr.mxu0 0.0
    %721 = vmatpush1.msra.mxu0 %v82
    %722 = vmatprep.subr.mxu0 0.0
    %723 = vmatpush1.msra.mxu0 %v79
    %724 = vmatprep.subr.mxu0 0.0
    %725 = vmatpush1.msra.mxu0 %v76
    %726 = vmatprep.subr.mxu0 0.0
    %727 = vmatpush1.msra.mxu0 %v73
    %728 = vmatprep.subr.mxu0 0.0
    %729 = vmatpush1.msra.mxu0 %v70
    %730 = vmatprep.subr.mxu0 0.0
    %731 = vmatpush2.msra.mxu0 0.0
    %732 = vmatprep.subr.mxu0 0.0
    %733 = vmatpush2.msra.mxu0 0.0
    %734 = vmatprep.subr.mxu0 0.0
    %735 = vmatpush2.msra.mxu0 0.0
    %736 = vmatprep.subr.mxu0 0.0
    %737 = vmatpush2.msra.mxu0 0.0
    %738 = vmatprep.subr.mxu0 0.0
    %739 = vmatpush2.msra.mxu0 0.0
    %740 = vmatprep.subr.mxu0 0.0
    %741 = vmatpush2.msra.mxu0 0.0
    %742 = vmatprep.subr.mxu0 0.0
    %743 = vmatpush2.msra.mxu0 0.0
    %744 = vmatprep.subr.mxu0 0.0
    %745 = vmatpush2.msra.mxu0 0.0
    %746 = vmatprep.subr.mxu0 0.0
    %747 = vmatpush2.msra.mxu0 0.0
    %748 = vmatprep.subr.mxu0 0.0
    %749 = vmatpush2.msra.mxu0 0.0
    %750 = vmatprep.subr.mxu0 0.0
    %751 = vmatpush2.msra.mxu0 0.0
    %752 = vmatprep.subr.mxu0 0.0
    %753 = vmatpush2.msra.mxu0 0.0
    %754 = vmatprep.subr.mxu0 0.0
    %755 = vmatpush2.msra.mxu0 0.0
    %756 = vmatprep.subr.mxu0 0.0
    %757 = vmatpush2.msra.mxu0 0.0
    %758 = vmatprep.subr.mxu0 0.0
    %759 = vmatpush2.msra.mxu0 0.0
    %760 = vmatprep.subr.mxu0 0.0
    %761 = vmatpush2.msra.mxu0 0.0
    %762 = vmatprep.mubr.f32.mxu0 0.0
    %763 = vmatmul.mubr.f32.gmra.mxu0 %v620
    %v764 = vpop.f32.mrf.mxu0
    %v765 = vadd.f32 %v132, %v764
    %v766 = vpop.f32.mrf.mxu0
    %767 = vdwg.mxu0
    %v768 = vadd.f32 %v624, %v694
    %v769 = vmax.f32 %v768, 0.0
    %v771 = vrot.slane %v624, 2
    %v773 = vadd.f32 %v771, %v696
    %v774 = vmax.f32 %v773, 0.0
    %v775 = vmul.f32 %v769, %v765
    %v776 = vrot.slane %v624, 4
    %v778 = vadd.f32 %v776, %v775
    %v779 = vtanh.pop %v778
    %v780 = vsub.f32 1.0, %v774
    %v781 = vmul.f32 %v780, %v620
    %v782 = vmul.f32 %v774, %v779
    %v783 = vadd.f32 %v781, %v782
    %v784 = vmul.f32 %v783, %v626
    %s785 = scalar_lea.vmem [#allocation9], 6
    %786 = vst [vmem:[%s785] sm:$0x3] %v784
    %s787 = scalar_lea.vmem [#allocation3], 24
    %v788 = vld [vmem:[%s787] sm:$0x3f]
    %s789 = scalar_lea.vmem [#allocation6], 8
    %v790 = vld [vmem:[%s789] sm:$0x3]
    %791 = vmatprep.subr.mxu0 %v114
    %792 = vmatpush1.msra.mxu0 %v113
    %793 = vmatprep.subr.mxu0 %v111
    %794 = vmatpush1.msra.mxu0 %v110
    %795 = vmatprep.subr.mxu0 %v108
    %796 = vmatpush1.msra.mxu0 %v107
    %797 = vmatprep.subr.mxu0 %v105
    %798 = vmatpush1.msra.mxu0 %v104
    %799 = vmatprep.subr.mxu0 %v102
    %800 = vmatpush1.msra.mxu0 %v101
    %801 = vmatprep.subr.mxu0 %v99
    %802 = vmatpush1.msra.mxu0 %v98
    %803 = vmatprep.subr.mxu0 %v96
    %804 = vmatpush1.msra.mxu0 %v95
    %805 = vmatprep.subr.mxu0 %v93
    %806 = vmatpush1.msra.mxu0 %v92
    %807 = vmatprep.subr.mxu0 %v90
    %808 = vmatpush1.msra.mxu0 %v89
    %809 = vmatprep.subr.mxu0 %v87
    %810 = vmatpush1.msra.mxu0 %v86
    %811 = vmatprep.subr.mxu0 %v84
    %812 = vmatpush1.msra.mxu0 %v83
    %813 = vmatprep.subr.mxu0 %v81
    %814 = vmatpush1.msra.mxu0 %v80
    %815 = vmatprep.subr.mxu0 %v78
    %816 = vmatpush1.msra.mxu0 %v77
    %817 = vmatprep.subr.mxu0 %v75
    %818 = vmatpush1.msra.mxu0 %v74
    %819 = vmatprep.subr.mxu0 %v72
    %820 = vmatpush1.msra.mxu0 %v71
    %821 = vmatprep.subr.mxu0 %v69
    %822 = vmatpush1.msra.mxu0 %v68
    %823 = vmatprep.subr.mxu0 0.0
    %824 = vmatpush2.msra.mxu0 0.0
    %825 = vmatprep.subr.mxu0 0.0
    %826 = vmatpush2.msra.mxu0 0.0
    %827 = vmatprep.subr.mxu0 0.0
    %828 = vmatpush2.msra.mxu0 0.0
    %829 = vmatprep.subr.mxu0 0.0
    %830 = vmatpush2.msra.mxu0 0.0
    %831 = vmatprep.subr.mxu0 0.0
    %832 = vmatpush2.msra.mxu0 0.0
    %833 = vmatprep.subr.mxu0 0.0
    %834 = vmatpush2.msra.mxu0 0.0
    %835 = vmatprep.subr.mxu0 0.0
    %836 = vmatpush2.msra.mxu0 0.0
    %837 = vmatprep.subr.mxu0 0.0
    %838 = vmatpush2.msra.mxu0 0.0
    %839 = vmatprep.subr.mxu0 0.0
    %840 = vmatpush2.msra.mxu0 0.0
    %841 = vmatprep.subr.mxu0 0.0
    %842 = vmatpush2.msra.mxu0 0.0
    %843 = vmatprep.subr.mxu0 0.0
    %844 = vmatpush2.msra.mxu0 0.0
    %845 = vmatprep.subr.mxu0 0.0
    %846 = vmatpush2.msra.mxu0 0.0
    %847 = vmatprep.subr.mxu0 0.0
    %848 = vmatpush2.msra.mxu0 0.0
    %849 = vmatprep.subr.mxu0 0.0
    %850 = vmatpush2.msra.mxu0 0.0
    %851 = vmatprep.subr.mxu0 0.0
    %852 = vmatpush2.msra.mxu0 0.0
    %853 = vmatprep.subr.mxu0 0.0
    %854 = vmatpush2.msra.mxu0 0.0
    %855 = vmatprep.mubr.f32.mxu0 0.0
    %856 = vmatmul.mubr.f32.gmra.mxu0 %v784
    %v857 = vpop.f32.mrf.mxu0
    %v858 = vadd.f32 %v124, %v857
    %v859 = vpop.f32.mrf.mxu0
    %v860 = vadd.f32 %v128, %v859
    %861 = vdwg.mxu0
    %862 = vmatprep.subr.mxu0 0.0
    %863 = vmatpush1.msra.mxu0 %v115
    %864 = vmatprep.subr.mxu0 0.0
    %865 = vmatpush1.msra.mxu0 %v112
    %866 = vmatprep.subr.mxu0 0.0
    %867 = vmatpush1.msra.mxu0 %v109
    %868 = vmatprep.subr.mxu0 0.0
    %869 = vmatpush1.msra.mxu0 %v106
    %870 = vmatprep.subr.mxu0 0.0
    %871 = vmatpush1.msra.mxu0 %v103
    %872 = vmatprep.subr.mxu0 0.0
    %873 = vmatpush1.msra.mxu0 %v100
    %874 = vmatprep.subr.mxu0 0.0
    %875 = vmatpush1.msra.mxu0 %v97
    %876 = vmatprep.subr.mxu0 0.0
    %877 = vmatpush1.msra.mxu0 %v94
    %878 = vmatprep.subr.mxu0 0.0
    %879 = vmatpush1.msra.mxu0 %v91
    %880 = vmatprep.subr.mxu0 0.0
    %881 = vmatpush1.msra.mxu0 %v88
    %882 = vmatprep.subr.mxu0 0.0
    %883 = vmatpush1.msra.mxu0 %v85
    %884 = vmatprep.subr.mxu0 0.0
    %885 = vmatpush1.msra.mxu0 %v82
    %886 = vmatprep.subr.mxu0 0.0
    %887 = vmatpush1.msra.mxu0 %v79
    %888 = vmatprep.subr.mxu0 0.0
    %889 = vmatpush1.msra.mxu0 %v76
    %890 = vmatprep.subr.mxu0 0.0
    %891 = vmatpush1.msra.mxu0 %v73
    %892 = vmatprep.subr.mxu0 0.0
    %893 = vmatpush1.msra.mxu0 %v70
    %894 = vmatprep.subr.mxu0 0.0
    %895 = vmatpush2.msra.mxu0 0.0
    %896 = vmatprep.subr.mxu0 0.0
    %897 = vmatpush2.msra.mxu0 0.0
    %898 = vmatprep.subr.mxu0 0.0
    %899 = vmatpush2.msra.mxu0 0.0
    %900 = vmatprep.subr.mxu0 0.0
    %901 = vmatpush2.msra.mxu0 0.0
    %902 = vmatprep.subr.mxu0 0.0
    %903 = vmatpush2.msra.mxu0 0.0
    %904 = vmatprep.subr.mxu0 0.0
    %905 = vmatpush2.msra.mxu0 0.0
    %906 = vmatprep.subr.mxu0 0.0
    %907 = vmatpush2.msra.mxu0 0.0
    %908 = vmatprep.subr.mxu0 0.0
    %909 = vmatpush2.msra.mxu0 0.0
    %910 = vmatprep.subr.mxu0 0.0
    %911 = vmatpush2.msra.mxu0 0.0
    %912 = vmatprep.subr.mxu0 0.0
    %913 = vmatpush2.msra.mxu0 0.0
    %914 = vmatprep.subr.mxu0 0.0
    %915 = vmatpush2.msra.mxu0 0.0
    %916 = vmatprep.subr.mxu0 0.0
    %917 = vmatpush2.msra.mxu0 0.0
    %918 = vmatprep.subr.mxu0 0.0
    %919 = vmatpush2.msra.mxu0 0.0
    %920 = vmatprep.subr.mxu0 0.0
    %921 = vmatpush2.msra.mxu0 0.0
    %922 = vmatprep.subr.mxu0 0.0
    %923 = vmatpush2.msra.mxu0 0.0
    %924 = vmatprep.subr.mxu0 0.0
    %925 = vmatpush2.msra.mxu0 0.0
    %926 = vmatprep.mubr.f32.mxu0 0.0
    %927 = vmatmul.mubr.f32.gmra.mxu0 %v784
    %v928 = vpop.f32.mrf.mxu0
    %v929 = vadd.f32 %v132, %v928
    %v930 = vpop.f32.mrf.mxu0
    %931 = vdwg.mxu0
    %v932 = vadd.f32 %v788, %v858
    %v933 = vmax.f32 %v932, 0.0
    %v935 = vrot.slane %v788, 2
    %v937 = vadd.f32 %v935, %v860
    %v938 = vmax.f32 %v937, 0.0
    %v939 = vmul.f32 %v933, %v929
    %v940 = vrot.slane %v788, 4
    %v942 = vadd.f32 %v940, %v939
    %v943 = vtanh.pop %v942
    %v944 = vsub.f32 1.0, %v938
    %v945 = vmul.f32 %v944, %v784
    %v946 = vmul.f32 %v938, %v943
    %v947 = vadd.f32 %v945, %v946
    %v948 = vmul.f32 %v947, %v790
    %s949 = scalar_lea.vmem [#allocation9], 8
    %950 = vst [vmem:[%s949] sm:$0x3] %v948
    %s951 = scalar_lea.vmem [#allocation3], 30
    %v952 = vld [vmem:[%s951] sm:$0x3f]
    %s953 = scalar_lea.vmem [#allocation6], 10
    %v954 = vld [vmem:[%s953] sm:$0x3]
    %955 = vmatprep.subr.mxu0 %v114
    %956 = vmatpush1.msra.mxu0 %v113
    %957 = vmatprep.subr.mxu0 %v111
    %958 = vmatpush1.msra.mxu0 %v110
    %959 = vmatprep.subr.mxu0 %v108
    %960 = vmatpush1.msra.mxu0 %v107
    %961 = vmatprep.subr.mxu0 %v105
    %962 = vmatpush1.msra.mxu0 %v104
    %963 = vmatprep.subr.mxu0 %v102
    %964 = vmatpush1.msra.mxu0 %v101
    %965 = vmatprep.subr.mxu0 %v99
    %966 = vmatpush1.msra.mxu0 %v98
    %967 = vmatprep.subr.mxu0 %v96
    %968 = vmatpush1.msra.mxu0 %v95
    %969 = vmatprep.subr.mxu0 %v93
    %970 = vmatpush1.msra.mxu0 %v92
    %971 = vmatprep.subr.mxu0 %v90
    %972 = vmatpush1.msra.mxu0 %v89
    %973 = vmatprep.subr.mxu0 %v87
    %974 = vmatpush1.msra.mxu0 %v86
    %975 = vmatprep.subr.mxu0 %v84
    %976 = vmatpush1.msra.mxu0 %v83
    %977 = vmatprep.subr.mxu0 %v81
    %978 = vmatpush1.msra.mxu0 %v80
    %979 = vmatprep.subr.mxu0 %v78
    %980 = vmatpush1.msra.mxu0 %v77
    %981 = vmatprep.subr.mxu0 %v75
    %982 = vmatpush1.msra.mxu0 %v74
    %983 = vmatprep.subr.mxu0 %v72
    %984 = vmatpush1.msra.mxu0 %v71
    %985 = vmatprep.subr.mxu0 %v69
    %986 = vmatpush1.msra.mxu0 %v68
    %987 = vmatprep.subr.mxu0 0.0
    %988 = vmatpush2.msra.mxu0 0.0
    %989 = vmatprep.subr.mxu0 0.0
    %990 = vmatpush2.msra.mxu0 0.0
    %991 = vmatprep.subr.mxu0 0.0
    %992 = vmatpush2.msra.mxu0 0.0
    %993 = vmatprep.subr.mxu0 0.0
    %994 = vmatpush2.msra.mxu0 0.0
    %995 = vmatprep.subr.mxu0 0.0
    %996 = vmatpush2.msra.mxu0 0.0
    %997 = vmatprep.subr.mxu0 0.0
    %998 = vmatpush2.msra.mxu0 0.0
    %999 = vmatprep.subr.mxu0 0.0
    %1000 = vmatpush2.msra.mxu0 0.0
    %1001 = vmatprep.subr.mxu0 0.0
    %1002 = vmatpush2.msra.mxu0 0.0
    %1003 = vmatprep.subr.mxu0 0.0
    %1004 = vmatpush2.msra.mxu0 0.0
    %1005 = vmatprep.subr.mxu0 0.0
    %1006 = vmatpush2.msra.mxu0 0.0
    %1007 = vmatprep.subr.mxu0 0.0
    %1008 = vmatpush2.msra.mxu0 0.0
    %1009 = vmatprep.subr.mxu0 0.0
    %1010 = vmatpush2.msra.mxu0 0.0
    %1011 = vmatprep.subr.mxu0 0.0
    %1012 = vmatpush2.msra.mxu0 0.0
    %1013 = vmatprep.subr.mxu0 0.0
    %1014 = vmatpush2.msra.mxu0 0.0
    %1015 = vmatprep.subr.mxu0 0.0
    %1016 = vmatpush2.msra.mxu0 0.0
    %1017 = vmatprep.subr.mxu0 0.0
    %1018 = vmatpush2.msra.mxu0 0.0
    %1019 = vmatprep.mubr.f32.mxu0 0.0
    %1020 = vmatmul.mubr.f32.gmra.mxu0 %v948
    %v1021 = vpop.f32.mrf.mxu0
    %v1022 = vadd.f32 %v124, %v1021
    %v1023 = vpop.f32.mrf.mxu0
    %v1024 = vadd.f32 %v128, %v1023
    %1025 = vdwg.mxu0
    %1026 = vmatprep.subr.mxu0 0.0
    %1027 = vmatpush1.msra.mxu0 %v115
    %1028 = vmatprep.subr.mxu0 0.0
    %1029 = vmatpush1.msra.mxu0 %v112
    %1030 = vmatprep.subr.mxu0 0.0
    %1031 = vmatpush1.msra.mxu0 %v109
    %1032 = vmatprep.subr.mxu0 0.0
    %1033 = vmatpush1.msra.mxu0 %v106
    %1034 = vmatprep.subr.mxu0 0.0
    %1035 = vmatpush1.msra.mxu0 %v103
    %1036 = vmatprep.subr.mxu0 0.0
    %1037 = vmatpush1.msra.mxu0 %v100
    %1038 = vmatprep.subr.mxu0 0.0
    %1039 = vmatpush1.msra.mxu0 %v97
    %1040 = vmatprep.subr.mxu0 0.0
    %1041 = vmatpush1.msra.mxu0 %v94
    %1042 = vmatprep.subr.mxu0 0.0
    %1043 = vmatpush1.msra.mxu0 %v91
    %1044 = vmatprep.subr.mxu0 0.0
    %1045 = vmatpush1.msra.mxu0 %v88
    %1046 = vmatprep.subr.mxu0 0.0
    %1047 = vmatpush1.msra.mxu0 %v85
    %1048 = vmatprep.subr.mxu0 0.0
    %1049 = vmatpush1.msra.mxu0 %v82
    %1050 = vmatprep.subr.mxu0 0.0
    %1051 = vmatpush1.msra.mxu0 %v79
    %1052 = vmatprep.subr.mxu0 0.0
    %1053 = vmatpush1.msra.mxu0 %v76
    %1054 = vmatprep.subr.mxu0 0.0
    %1055 = vmatpush1.msra.mxu0 %v73
    %1056 = vmatprep.subr.mxu0 0.0
    %1057 = vmatpush1.msra.mxu0 %v70
    %1058 = vmatprep.subr.mxu0 0.0
    %1059 = vmatpush2.msra.mxu0 0.0
    %1060 = vmatprep.subr.mxu0 0.0
    %1061 = vmatpush2.msra.mxu0 0.0
    %1062 = vmatprep.subr.mxu0 0.0
    %1063 = vmatpush2.msra.mxu0 0.0
    %1064 = vmatprep.subr.mxu0 0.0
    %1065 = vmatpush2.msra.mxu0 0.0
    %1066 = vmatprep.subr.mxu0 0.0
    %1067 = vmatpush2.msra.mxu0 0.0
    %1068 = vmatprep.subr.mxu0 0.0
    %1069 = vmatpush2.msra.mxu0 0.0
    %1070 = vmatprep.subr.mxu0 0.0
    %1071 = vmatpush2.msra.mxu0 0.0
    %1072 = vmatprep.subr.mxu0 0.0
    %1073 = vmatpush2.msra.mxu0 0.0
    %1074 = vmatprep.subr.mxu0 0.0
    %1075 = vmatpush2.msra.mxu0 0.0
    %1076 = vmatprep.subr.mxu0 0.0
    %1077 = vmatpush2.msra.mxu0 0.0
    %1078 = vmatprep.subr.mxu0 0.0
    %1079 = vmatpush2.msra.mxu0 0.0
    %1080 = vmatprep.subr.mxu0 0.0
    %1081 = vmatpush2.msra.mxu0 0.0
    %1082 = vmatprep.subr.mxu0 0.0
    %1083 = vmatpush2.msra.mxu0 0.0
    %1084 = vmatprep.subr.mxu0 0.0
    %1085 = vmatpush2.msra.mxu0 0.0
    %1086 = vmatprep.subr.mxu0 0.0
    %1087 = vmatpush2.msra.mxu0 0.0
    %1088 = vmatprep.subr.mxu0 0.0
    %1089 = vmatpush2.msra.mxu0 0.0
    %1090 = vmatprep.mubr.f32.mxu0 0.0
    %1091 = vmatmul.mubr.f32.gmra.mxu0 %v948
    %v1092 = vpop.f32.mrf.mxu0
    %v1093 = vadd.f32 %v132, %v1092
    %v1094 = vpop.f32.mrf.mxu0
    %1095 = vdwg.mxu0
    %v1096 = vadd.f32 %v952, %v1022
    %v1097 = vmax.f32 %v1096, 0.0
    %v1099 = vrot.slane %v952, 2
    %v1101 = vadd.f32 %v1099, %v1024
    %v1102 = vmax.f32 %v1101, 0.0
    %v1103 = vmul.f32 %v1097, %v1093
    %v1104 = vrot.slane %v952, 4
    %v1106 = vadd.f32 %v1104, %v1103
    %v1107 = vtanh.pop %v1106
    %v1108 = vsub.f32 1.0, %v1102
    %v1109 = vmul.f32 %v1108, %v948
    %v1110 = vmul.f32 %v1102, %v1107
    %v1111 = vadd.f32 %v1109, %v1110
    %v1112 = vmul.f32 %v1111, %v954
    %s1113 = scalar_lea.vmem [#allocation9], 10
    %1114 = vst [vmem:[%s1113] sm:$0x3] %v1112
    %s1115 = scalar_lea.vmem [#allocation3], 36
    %v1116 = vld [vmem:[%s1115] sm:$0x3f]
    %s1117 = scalar_lea.vmem [#allocation6], 12
    %v1118 = vld [vmem:[%s1117] sm:$0x3]
    %1119 = vmatprep.subr.mxu0 %v114
    %1120 = vmatpush1.msra.mxu0 %v113
    %1121 = vmatprep.subr.mxu0 %v111
    %1122 = vmatpush1.msra.mxu0 %v110
    %1123 = vmatprep.subr.mxu0 %v108
    %1124 = vmatpush1.msra.mxu0 %v107
    %1125 = vmatprep.subr.mxu0 %v105
    %1126 = vmatpush1.msra.mxu0 %v104
    %1127 = vmatprep.subr.mxu0 %v102
    %1128 = vmatpush1.msra.mxu0 %v101
    %1129 = vmatprep.subr.mxu0 %v99
    %1130 = vmatpush1.msra.mxu0 %v98
    %1131 = vmatprep.subr.mxu0 %v96
    %1132 = vmatpush1.msra.mxu0 %v95
    %1133 = vmatprep.subr.mxu0 %v93
    %1134 = vmatpush1.msra.mxu0 %v92
    %1135 = vmatprep.subr.mxu0 %v90
    %1136 = vmatpush1.msra.mxu0 %v89
    %1137 = vmatprep.subr.mxu0 %v87
    %1138 = vmatpush1.msra.mxu0 %v86
    %1139 = vmatprep.subr.mxu0 %v84
    %1140 = vmatpush1.msra.mxu0 %v83
    %1141 = vmatprep.subr.mxu0 %v81
    %1142 = vmatpush1.msra.mxu0 %v80
    %1143 = vmatprep.subr.mxu0 %v78
    %1144 = vmatpush1.msra.mxu0 %v77
    %1145 = vmatprep.subr.mxu0 %v75
    %1146 = vmatpush1.msra.mxu0 %v74
    %1147 = vmatprep.subr.mxu0 %v72
    %1148 = vmatpush1.msra.mxu0 %v71
    %1149 = vmatprep.subr.mxu0 %v69
    %1150 = vmatpush1.msra.mxu0 %v68
    %1151 = vmatprep.subr.mxu0 0.0
    %1152 = vmatpush2.msra.mxu0 0.0
    %1153 = vmatprep.subr.mxu0 0.0
    %1154 = vmatpush2.msra.mxu0 0.0
    %1155 = vmatprep.subr.mxu0 0.0
    %1156 = vmatpush2.msra.mxu0 0.0
    %1157 = vmatprep.subr.mxu0 0.0
    %1158 = vmatpush2.msra.mxu0 0.0
    %1159 = vmatprep.subr.mxu0 0.0
    %1160 = vmatpush2.msra.mxu0 0.0
    %1161 = vmatprep.subr.mxu0 0.0
    %1162 = vmatpush2.msra.mxu0 0.0
    %1163 = vmatprep.subr.mxu0 0.0
    %1164 = vmatpush2.msra.mxu0 0.0
    %1165 = vmatprep.subr.mxu0 0.0
    %1166 = vmatpush2.msra.mxu0 0.0
    %1167 = vmatprep.subr.mxu0 0.0
    %1168 = vmatpush2.msra.mxu0 0.0
    %1169 = vmatprep.subr.mxu0 0.0
    %1170 = vmatpush2.msra.mxu0 0.0
    %1171 = vmatprep.subr.mxu0 0.0
    %1172 = vmatpush2.msra.mxu0 0.0
    %1173 = vmatprep.subr.mxu0 0.0
    %1174 = vmatpush2.msra.mxu0 0.0
    %1175 = vmatprep.subr.mxu0 0.0
    %1176 = vmatpush2.msra.mxu0 0.0
    %1177 = vmatprep.subr.mxu0 0.0
    %1178 = vmatpush2.msra.mxu0 0.0
    %1179 = vmatprep.subr.mxu0 0.0
    %1180 = vmatpush2.msra.mxu0 0.0
    %1181 = vmatprep.subr.mxu0 0.0
    %1182 = vmatpush2.msra.mxu0 0.0
    %1183 = vmatprep.mubr.f32.mxu0 0.0
    %1184 = vmatmul.mubr.f32.gmra.mxu0 %v1112
    %v1185 = vpop.f32.mrf.mxu0
    %v1186 = vadd.f32 %v124, %v1185
    %v1187 = vpop.f32.mrf.mxu0
    %v1188 = vadd.f32 %v128, %v1187
    %1189 = vdwg.mxu0
    %1190 = vmatprep.subr.mxu0 0.0
    %1191 = vmatpush1.msra.mxu0 %v115
    %1192 = vmatprep.subr.mxu0 0.0
    %1193 = vmatpush1.msra.mxu0 %v112
    %1194 = vmatprep.subr.mxu0 0.0
    %1195 = vmatpush1.msra.mxu0 %v109
    %1196 = vmatprep.subr.mxu0 0.0
    %1197 = vmatpush1.msra.mxu0 %v106
    %1198 = vmatprep.subr.mxu0 0.0
    %1199 = vmatpush1.msra.mxu0 %v103
    %1200 = vmatprep.subr.mxu0 0.0
    %1201 = vmatpush1.msra.mxu0 %v100
    %1202 = vmatprep.subr.mxu0 0.0
    %1203 = vmatpush1.msra.mxu0 %v97
    %1204 = vmatprep.subr.mxu0 0.0
    %1205 = vmatpush1.msra.mxu0 %v94
    %1206 = vmatprep.subr.mxu0 0.0
    %1207 = vmatpush1.msra.mxu0 %v91
    %1208 = vmatprep.subr.mxu0 0.0
    %1209 = vmatpush1.msra.mxu0 %v88
    %1210 = vmatprep.subr.mxu0 0.0
    %1211 = vmatpush1.msra.mxu0 %v85
    %1212 = vmatprep.subr.mxu0 0.0
    %1213 = vmatpush1.msra.mxu0 %v82
    %1214 = vmatprep.subr.mxu0 0.0
    %1215 = vmatpush1.msra.mxu0 %v79
    %1216 = vmatprep.subr.mxu0 0.0
    %1217 = vmatpush1.msra.mxu0 %v76
    %1218 = vmatprep.subr.mxu0 0.0
    %1219 = vmatpush1.msra.mxu0 %v73
    %1220 = vmatprep.subr.mxu0 0.0
    %1221 = vmatpush1.msra.mxu0 %v70
    %1222 = vmatprep.subr.mxu0 0.0
    %1223 = vmatpush2.msra.mxu0 0.0
    %1224 = vmatprep.subr.mxu0 0.0
    %1225 = vmatpush2.msra.mxu0 0.0
    %1226 = vmatprep.subr.mxu0 0.0
    %1227 = vmatpush2.msra.mxu0 0.0
    %1228 = vmatprep.subr.mxu0 0.0
    %1229 = vmatpush2.msra.mxu0 0.0
    %1230 = vmatprep.subr.mxu0 0.0
    %1231 = vmatpush2.msra.mxu0 0.0
    %1232 = vmatprep.subr.mxu0 0.0
    %1233 = vmatpush2.msra.mxu0 0.0
    %1234 = vmatprep.subr.mxu0 0.0
    %1235 = vmatpush2.msra.mxu0 0.0
    %1236 = vmatprep.subr.mxu0 0.0
    %1237 = vmatpush2.msra.mxu0 0.0
    %1238 = vmatprep.subr.mxu0 0.0
    %1239 = vmatpush2.msra.mxu0 0.0
    %1240 = vmatprep.subr.mxu0 0.0
    %1241 = vmatpush2.msra.mxu0 0.0
    %1242 = vmatprep.subr.mxu0 0.0
    %1243 = vmatpush2.msra.mxu0 0.0
    %1244 = vmatprep.subr.mxu0 0.0
    %1245 = vmatpush2.msra.mxu0 0.0
    %1246 = vmatprep.subr.mxu0 0.0
    %1247 = vmatpush2.msra.mxu0 0.0
    %1248 = vmatprep.subr.mxu0 0.0
    %1249 = vmatpush2.msra.mxu0 0.0
    %1250 = vmatprep.subr.mxu0 0.0
    %1251 = vmatpush2.msra.mxu0 0.0
    %1252 = vmatprep.subr.mxu0 0.0
    %1253 = vmatpush2.msra.mxu0 0.0
    %1254 = vmatprep.mubr.f32.mxu0 0.0
    %1255 = vmatmul.mubr.f32.gmra.mxu0 %v1112
    %v1256 = vpop.f32.mrf.mxu0
    %v1257 = vadd.f32 %v132, %v1256
    %v1258 = vpop.f32.mrf.mxu0
    %1259 = vdwg.mxu0
    %v1260 = vadd.f32 %v1116, %v1186
    %v1261 = vmax.f32 %v1260, 0.0
    %v1263 = vrot.slane %v1116, 2
    %v1265 = vadd.f32 %v1263, %v1188
    %v1266 = vmax.f32 %v1265, 0.0
    %v1267 = vmul.f32 %v1261, %v1257
    %v1268 = vrot.slane %v1116, 4
    %v1270 = vadd.f32 %v1268, %v1267
    %v1271 = vtanh.pop %v1270
    %v1272 = vsub.f32 1.0, %v1266
    %v1273 = vmul.f32 %v1272, %v1112
    %v1274 = vmul.f32 %v1266, %v1271
    %v1275 = vadd.f32 %v1273, %v1274
    %v1276 = vmul.f32 %v1275, %v1118
    %s1277 = scalar_lea.vmem [#allocation9], 12
    %1278 = vst [vmem:[%s1277] sm:$0x3] %v1276
    %s1279 = scalar_lea.vmem [#allocation3], 42
    %v1280 = vld [vmem:[%s1279] sm:$0x3f]
    %s1281 = scalar_lea.vmem [#allocation6], 14
    %v1282 = vld [vmem:[%s1281] sm:$0x3]
    %1283 = vmatprep.subr.mxu0 %v114
    %1284 = vmatpush1.msra.mxu0 %v113
    %1285 = vmatprep.subr.mxu0 %v111
    %1286 = vmatpush1.msra.mxu0 %v110
    %1287 = vmatprep.subr.mxu0 %v108
    %1288 = vmatpush1.msra.mxu0 %v107
    %1289 = vmatprep.subr.mxu0 %v105
    %1290 = vmatpush1.msra.mxu0 %v104
    %1291 = vmatprep.subr.mxu0 %v102
    %1292 = vmatpush1.msra.mxu0 %v101
    %1293 = vmatprep.subr.mxu0 %v99
    %1294 = vmatpush1.msra.mxu0 %v98
    %1295 = vmatprep.subr.mxu0 %v96
    %1296 = vmatpush1.msra.mxu0 %v95
    %1297 = vmatprep.subr.mxu0 %v93
    %1298 = vmatpush1.msra.mxu0 %v92
    %1299 = vmatprep.subr.mxu0 %v90
    %1300 = vmatpush1.msra.mxu0 %v89
    %1301 = vmatprep.subr.mxu0 %v87
    %1302 = vmatpush1.msra.mxu0 %v86
    %1303 = vmatprep.subr.mxu0 %v84
    %1304 = vmatpush1.msra.mxu0 %v83
    %1305 = vmatprep.subr.mxu0 %v81
    %1306 = vmatpush1.msra.mxu0 %v80
    %1307 = vmatprep.subr.mxu0 %v78
    %1308 = vmatpush1.msra.mxu0 %v77
    %1309 = vmatprep.subr.mxu0 %v75
    %1310 = vmatpush1.msra.mxu0 %v74
    %1311 = vmatprep.subr.mxu0 %v72
    %1312 = vmatpush1.msra.mxu0 %v71
    %1313 = vmatprep.subr.mxu0 %v69
    %1314 = vmatpush1.msra.mxu0 %v68
    %1315 = vmatprep.subr.mxu0 0.0
    %1316 = vmatpush2.msra.mxu0 0.0
    %1317 = vmatprep.subr.mxu0 0.0
    %1318 = vmatpush2.msra.mxu0 0.0
    %1319 = vmatprep.subr.mxu0 0.0
    %1320 = vmatpush2.msra.mxu0 0.0
    %1321 = vmatprep.subr.mxu0 0.0
    %1322 = vmatpush2.msra.mxu0 0.0
    %1323 = vmatprep.subr.mxu0 0.0
    %1324 = vmatpush2.msra.mxu0 0.0
    %1325 = vmatprep.subr.mxu0 0.0
    %1326 = vmatpush2.msra.mxu0 0.0
    %1327 = vmatprep.subr.mxu0 0.0
    %1328 = vmatpush2.msra.mxu0 0.0
    %1329 = vmatprep.subr.mxu0 0.0
    %1330 = vmatpush2.msra.mxu0 0.0
    %1331 = vmatprep.subr.mxu0 0.0
    %1332 = vmatpush2.msra.mxu0 0.0
    %1333 = vmatprep.subr.mxu0 0.0
    %1334 = vmatpush2.msra.mxu0 0.0
    %1335 = vmatprep.subr.mxu0 0.0
    %1336 = vmatpush2.msra.mxu0 0.0
    %1337 = vmatprep.subr.mxu0 0.0
    %1338 = vmatpush2.msra.mxu0 0.0
    %1339 = vmatprep.subr.mxu0 0.0
    %1340 = vmatpush2.msra.mxu0 0.0
    %1341 = vmatprep.subr.mxu0 0.0
    %1342 = vmatpush2.msra.mxu0 0.0
    %1343 = vmatprep.subr.mxu0 0.0
    %1344 = vmatpush2.msra.mxu0 0.0
    %1345 = vmatprep.subr.mxu0 0.0
    %1346 = vmatpush2.msra.mxu0 0.0
    %1347 = vmatprep.mubr.f32.mxu0 0.0
    %1348 = vmatmul.mubr.f32.gmra.mxu0 %v1276
    %v1349 = vpop.f32.mrf.mxu0
    %v1350 = vadd.f32 %v124, %v1349
    %v1351 = vpop.f32.mrf.mxu0
    %v1352 = vadd.f32 %v128, %v1351
    %1353 = vdwg.mxu0
    %1354 = vmatprep.subr.mxu0 0.0
    %1355 = vmatpush1.msra.mxu0 %v115
    %1356 = vmatprep.subr.mxu0 0.0
    %1357 = vmatpush1.msra.mxu0 %v112
    %1358 = vmatprep.subr.mxu0 0.0
    %1359 = vmatpush1.msra.mxu0 %v109
    %1360 = vmatprep.subr.mxu0 0.0
    %1361 = vmatpush1.msra.mxu0 %v106
    %1362 = vmatprep.subr.mxu0 0.0
    %1363 = vmatpush1.msra.mxu0 %v103
    %1364 = vmatprep.subr.mxu0 0.0
    %1365 = vmatpush1.msra.mxu0 %v100
    %1366 = vmatprep.subr.mxu0 0.0
    %1367 = vmatpush1.msra.mxu0 %v97
    %1368 = vmatprep.subr.mxu0 0.0
    %1369 = vmatpush1.msra.mxu0 %v94
    %1370 = vmatprep.subr.mxu0 0.0
    %1371 = vmatpush1.msra.mxu0 %v91
    %1372 = vmatprep.subr.mxu0 0.0
    %1373 = vmatpush1.msra.mxu0 %v88
    %1374 = vmatprep.subr.mxu0 0.0
    %1375 = vmatpush1.msra.mxu0 %v85
    %1376 = vmatprep.subr.mxu0 0.0
    %1377 = vmatpush1.msra.mxu0 %v82
    %1378 = vmatprep.subr.mxu0 0.0
    %1379 = vmatpush1.msra.mxu0 %v79
    %1380 = vmatprep.subr.mxu0 0.0
    %1381 = vmatpush1.msra.mxu0 %v76
    %1382 = vmatprep.subr.mxu0 0.0
    %1383 = vmatpush1.msra.mxu0 %v73
    %1384 = vmatprep.subr.mxu0 0.0
    %1385 = vmatpush1.msra.mxu0 %v70
    %1386 = vmatprep.subr.mxu0 0.0
    %1387 = vmatpush2.msra.mxu0 0.0
    %1388 = vmatprep.subr.mxu0 0.0
    %1389 = vmatpush2.msra.mxu0 0.0
    %1390 = vmatprep.subr.mxu0 0.0
    %1391 = vmatpush2.msra.mxu0 0.0
    %1392 = vmatprep.subr.mxu0 0.0
    %1393 = vmatpush2.msra.mxu0 0.0
    %1394 = vmatprep.subr.mxu0 0.0
    %1395 = vmatpush2.msra.mxu0 0.0
    %1396 = vmatprep.subr.mxu0 0.0
    %1397 = vmatpush2.msra.mxu0 0.0
    %1398 = vmatprep.subr.mxu0 0.0
    %1399 = vmatpush2.msra.mxu0 0.0
    %1400 = vmatprep.subr.mxu0 0.0
    %1401 = vmatpush2.msra.mxu0 0.0
    %1402 = vmatprep.subr.mxu0 0.0
    %1403 = vmatpush2.msra.mxu0 0.0
    %1404 = vmatprep.subr.mxu0 0.0
    %1405 = vmatpush2.msra.mxu0 0.0
    %1406 = vmatprep.subr.mxu0 0.0
    %1407 = vmatpush2.msra.mxu0 0.0
    %1408 = vmatprep.subr.mxu0 0.0
    %1409 = vmatpush2.msra.mxu0 0.0
    %1410 = vmatprep.subr.mxu0 0.0
    %1411 = vmatpush2.msra.mxu0 0.0
    %1412 = vmatprep.subr.mxu0 0.0
    %1413 = vmatpush2.msra.mxu0 0.0
    %1414 = vmatprep.subr.mxu0 0.0
    %1415 = vmatpush2.msra.mxu0 0.0
    %1416 = vmatprep.subr.mxu0 0.0
    %1417 = vmatpush2.msra.mxu0 0.0
    %1418 = vmatprep.mubr.f32.mxu0 0.0
    %1419 = vmatmul.mubr.f32.gmra.mxu0 %v1276
    %v1420 = vpop.f32.mrf.mxu0
    %v1421 = vadd.f32 %v132, %v1420
    %v1422 = vpop.f32.mrf.mxu0
    %1423 = vdwg.mxu0
    %v1424 = vadd.f32 %v1280, %v1350
    %v1425 = vmax.f32 %v1424, 0.0
    %v1427 = vrot.slane %v1280, 2
    %v1429 = vadd.f32 %v1427, %v1352
    %v1430 = vmax.f32 %v1429, 0.0
    %v1431 = vmul.f32 %v1425, %v1421
    %v1432 = vrot.slane %v1280, 4
    %v1434 = vadd.f32 %v1432, %v1431
    %v1435 = vtanh.pop %v1434
    %v1436 = vsub.f32 1.0, %v1430
    %v1437 = vmul.f32 %v1436, %v1276
    %v1438 = vmul.f32 %v1430, %v1435
    %v1439 = vadd.f32 %v1437, %v1438
    %v1440 = vmul.f32 %v1439, %v1282
    %s1441 = scalar_lea.vmem [#allocation9], 14
    %1442 = vst [vmem:[%s1441] sm:$0x3] %v1440
    %1443 = vst [vmem:[#allocation2] sm:$0x3] %v1440
    // Predicated region
    $region38: #{tpu_custom_call.1} parent=1 // pred_check
      _
    $region39: #{tpu_custom_call.1} parent=1 // pred_check_branch
      %1445 = sbr.rel (0) target = $region41
    $region40: #{tpu_custom_call.1} parent=1 // pred_region
      %s1447 = ssub.s32 256, 256
      %1448 = vsyncadd [#allocation5], %s1447
      %s1449 = sshll.u32 [#allocation9], 4
      %s1450 = int_to_ptr.vmem [resolvable:$true] %s1449
      %1455 = dma.vmem_to_hbm [thread:$0]  %s1450, 256, %s5, [#allocation5], 32, 32, 2
    $region41: #{tpu_custom_call.1} parent=1 // pred_fallthru
      _
    // Predicated region
    $region42: #{tpu_custom_call.1} parent=1 // pred_check
      _
    $region43: #{tpu_custom_call.1} parent=1 // pred_check_branch
      %1457 = sbr.rel (0) target = $region45
    $region44: #{tpu_custom_call.1} parent=1 // pred_region
      %1458 = dma.done [#allocation5], 256
    $region45: #{tpu_custom_call.1} parent=1 // pred_fallthru
      _
    %1459 = vsyncpa [#allocation4], 1
    %1460 = vsyncpa [#allocation7], 1
    %1461 = vsyncpa [#allocation5], 1

</llo_original>
